<compile_context>
chip_gen: v7x
topology: tpu7x:2x2x1
jax: 0.10.0
libtpu: 0.0.40
codegen_flags: <defaults>
</compile_context>

<pallas_src>
import functools

import jax
import jax.numpy as jnp
from jax.experimental import pallas as pl
from jax.experimental.pallas import tpu as pltpu


# ---------------------------------------------------------------------------
# Per-generation configuration
# ---------------------------------------------------------------------------
@functools.lru_cache(maxsize=None)
def _vmem_capacity_bytes():
    """Physical per-TensorCore VMEM; falls back to 128 MiB (v5e/v6e) if the
    query is unavailable."""
    try:
        info = pltpu.get_tpu_info()
        cap = int(getattr(info, "vmem_capacity_bytes", 0) or 0)
        if cap > 0:
            return cap
    except Exception:
        pass
    return 128 * 1024 * 1024


def _vmem_limit_bytes():
    """Scoped-VMEM budget handed to Mosaic: leave headroom below physical."""
    if _vmem_capacity_bytes() <= 64 * 1024 * 1024:   # v7x: 64 MiB physical/TC
        return 48 * 1024 * 1024
    return 100 * 1024 * 1024                         # v5e/v6e: 128 MiB physical


def _default_tile():
    """Bigger tiles amortize per-grid-step overhead on 128 MiB chips."""
    return 256 if _vmem_capacity_bytes() <= 64 * 1024 * 1024 else 512


# ---------------------------------------------------------------------------
# Kernel 1: dense linear layer  y = x @ W + b
# ---------------------------------------------------------------------------
_K_SINGLE_SHOT_MAX = 2048   # ViT-sized reductions: one-shot K, no acc scratch


def _linear_fullk_kernel(x_ref, w_ref, b_ref, o_ref):
    acc = jnp.dot(x_ref[...], w_ref[...], preferred_element_type=jnp.float32)
    o_ref[...] = (acc + b_ref[...].astype(jnp.float32)).astype(o_ref.dtype)


def _linear_tiledk_kernel(x_ref, w_ref, b_ref, o_ref, acc_ref):
    k = pl.program_id(2)

    @pl.when(k == 0)
    def _init():
        acc_ref[...] = jnp.zeros_like(acc_ref)

    acc_ref[...] += jnp.dot(x_ref[...], w_ref[...],
                            preferred_element_type=jnp.float32)

    @pl.when(k == pl.num_programs(2) - 1)
    def _finalize():
        out = acc_ref[...] + b_ref[...].astype(jnp.float32)
        o_ref[...] = out.astype(o_ref.dtype)


def _pick_k_tile(K, candidates=(512, 256, 128)):
    """Largest candidate dividing K exactly (the reduction axis must never see
    padded garbage); falls back to the full K."""
    for t in candidates:
        if t <= K and K % t == 0:
            return t
    return K


def linear(x2d, w, b, *, tm=None, tn=None):
    """x2d: (M, K), w: (K, Nout), b: (Nout,) -> (M, Nout).

    For K <= 2048 (every ViT projection) the reduction is single-shot: 2-D
    (M, N) grid, no f32 accumulator scratch, each weight block fetched exactly
    once per (i, j).  For larger K a 3-D tiled reduction with an f32 VMEM
    accumulator is used.  Operands stay in the caller's dtype (bf16 inputs run
    the MXU at full rate); accumulation is always f32.
    """
    M, K = x2d.shape
    Kw, Nout = w.shape
    assert K == Kw and b.shape == (Nout,)

    t_def = _default_tile()
    tm = M if M <= (tm or t_def) else (tm or t_def)        # mult of 8 when tiled
    tn = Nout if Nout <= (tn or t_def) else (tn or t_def)  # mult of 128 when tiled
    b2 = b.reshape(1, Nout)
    vmem = _vmem_limit_bytes()

    if K <= _K_SINGLE_SHOT_MAX:
        grid = (pl.cdiv(M, tm), pl.cdiv(Nout, tn))
        return pl.pallas_call(
            _linear_fullk_kernel,
            out_shape=jax.ShapeDtypeStruct((M, Nout), x2d.dtype),
            grid=grid,
            in_specs=[
                pl.BlockSpec((tm, K), lambda i, j: (i, 0)),
                pl.BlockSpec((K, tn), lambda i, j: (0, j)),
                pl.BlockSpec((1, tn), lambda i, j: (0, j)),
            ],
            out_specs=pl.BlockSpec((tm, tn), lambda i, j: (i, j)),
            compiler_params=pltpu.CompilerParams(
                dimension_semantics=("parallel", "parallel"),
                vmem_limit_bytes=vmem),
        )(x2d, w, b2)

    tk = _pick_k_tile(K)
    grid = (pl.cdiv(M, tm), pl.cdiv(Nout, tn), K // tk)
    return pl.pallas_call(
        _linear_tiledk_kernel,
        out_shape=jax.ShapeDtypeStruct((M, Nout), x2d.dtype),
        grid_spec=pltpu.PrefetchScalarGridSpec(
            num_scalar_prefetch=0,
            grid=grid,
            in_specs=[
                pl.BlockSpec((tm, tk), lambda i, j, k: (i, k)),
                pl.BlockSpec((tk, tn), lambda i, j, k: (k, j)),
                pl.BlockSpec((1, tn), lambda i, j, k: (0, j)),
            ],
            out_specs=pl.BlockSpec((tm, tn), lambda i, j, k: (i, j)),
            scratch_shapes=[pltpu.VMEM((tm, tn), jnp.float32)],
        ),
        compiler_params=pltpu.CompilerParams(
            dimension_semantics=("parallel", "parallel", "arbitrary"),
            vmem_limit_bytes=vmem),
    )(x2d, w, b2)


# ---------------------------------------------------------------------------
# Kernel 2: attention over all heads of one (batch, q-tile) block.
#   att = softmax(q k^T) / sqrt(E);  ctx = att @ v
# q block: (tq, E) head-major columns; kv block: (N, 2E) with [k | v] slabs.
# ---------------------------------------------------------------------------
def _attention_kernel(q_ref, kv_ref, o_ref, *, num_heads, head_dim, emb_size,
                      scale):
    q_all = q_ref[...]            # (tq, E)
    kv_all = kv_ref[...]          # (N, 2E) = [k_allheads | v_allheads]

    ctxs = []
    for h in range(num_heads):                    # static unroll over heads
        lo = h * head_dim
        q = q_all[:, lo:lo + head_dim]                              # (tq, D)
        k = kv_all[:, lo:lo + head_dim]                             # (N, D)
        v = kv_all[:, emb_size + lo:emb_size + lo + head_dim]       # (N, D)

        # energy[i, j] = sum_d q[i, d] * k[j, d]  (no explicit k.T relayout)
        energy = jax.lax.dot_general(
            q, k, (((1,), (1,)), ((), ())),
            preferred_element_type=jnp.float32)                     # (tq, N)

        # Numerically-stable softmax, kept unnormalized in f32; the row-sum
        # reciprocal and the module's post-softmax 1/sqrt(E) are folded into a
        # single EUP reciprocal applied to the small (tq, D) context.
        m = jnp.max(energy, axis=-1, keepdims=True)
        e = jnp.exp(energy - m)
        s = jnp.sum(e, axis=-1, keepdims=True)                      # (tq, 1)

        ctx = jnp.dot(e.astype(v.dtype), v,
                      preferred_element_type=jnp.float32)           # (tq, D)
        ctx = ctx * pl.reciprocal(s * scale, approx=True)
        ctxs.append(ctx)

    # One full-width lane-dense store instead of H masked sub-128-lane stores.
    o_ref[...] = jnp.concatenate(ctxs, axis=-1).astype(o_ref.dtype)


def _pick_q_tile(N):
    max_tile = 256 if _vmem_capacity_bytes() <= 64 * 1024 * 1024 else 512
    if N <= max_tile:
        return N
    for t in (max_tile, 256, 128):
        if t <= N and N % t == 0:
            return t
    return N


def attention(q, kv, *, num_heads, emb_size):
    """q: (B, N, E), kv: (B, N, 2E) with head-major [k | v] columns -> (B, N, E)."""
    B, N, E = q.shape
    assert E == emb_size and kv.shape == (B, N, 2 * E)
    head_dim = E // num_heads
    tq = _pick_q_tile(N)
    kernel = functools.partial(
        _attention_kernel, num_heads=num_heads, head_dim=head_dim,
        emb_size=E, scale=float(E) ** 0.5)
    # TODO(synk): for long sequences (N >~ 1k on v7x, ~2k on v5e/v6e) switch to
    # a flash-style KV-tiled grid with online softmax instead of (tq, N) energy.
    return pl.pallas_call(
        kernel,
        out_shape=jax.ShapeDtypeStruct((B, N, E), q.dtype),
        grid=(B, N // tq),
        in_specs=[
            pl.BlockSpec((pl.Squeezed(), tq, E), lambda b, qi: (b, qi, 0)),
            pl.BlockSpec((pl.Squeezed(), N, 2 * E), lambda b, qi: (b, 0, 0)),
        ],
        out_specs=pl.BlockSpec((pl.Squeezed(), tq, E), lambda b, qi: (b, qi, 0)),
        compiler_params=pltpu.CompilerParams(
            dimension_semantics=("parallel", "parallel"),
            vmem_limit_bytes=_vmem_limit_bytes()),
    )(q, kv)


# ---------------------------------------------------------------------------
# Full module forward
# ---------------------------------------------------------------------------
def multi_head_attention(x, prepared_params, num_heads):
    """x: (B, N, E).  prepared_params: see prepare_params().  -> (B, N, E)."""
    B, N, E = x.shape
    compute_dtype = prepared_params["w_q"].dtype       # bf16 params -> bf16 MXU
    x2 = x.reshape(B * N, E).astype(compute_dtype)

    # q / kv projections from the once-permuted, once-split qkv weight:
    # columns are already contiguous head-major slabs, so no stride-3 gather,
    # no host transpose, and k/v never get re-streamed per q-tile as 3E slabs.
    q = linear(x2, prepared_params["w_q"], prepared_params["b_q"])
    kv = linear(x2, prepared_params["w_kv"], prepared_params["b_kv"])
    q = q.reshape(B, N, E)
    kv = kv.reshape(B, N, 2 * E)

    # Per (batch, q-tile) attention; head split/merge handled inside the kernel.
    ctx = attention(q, kv, num_heads=num_heads, emb_size=E)        # (B, N, E)

    # Output projection.
    out = linear(ctx.reshape(B * N, E),
                 prepared_params["w_proj"], prepared_params["b_proj"])
    return out.reshape(B, N, E).astype(x.dtype)


# ---------------------------------------------------------------------------
# Parameters (shapes from nn.Linear(E, 3E) and nn.Linear(E, E))
# ---------------------------------------------------------------------------
def init_params(key, emb_size):
    """Torch-layout parameters: qkv output columns ordered '(h d qkv)'."""
    k1, k2, k3, k4 = jax.random.split(key, 4)
    s = 1.0 / (emb_size ** 0.5)
    return {
        # stored (in, out) so y = x @ W + b (equivalent to torch's x @ W.T + b)
        "w_qkv": jax.random.uniform(k1, (emb_size, 3 * emb_size),
                                    jnp.float32, -s, s),
        "b_qkv": jax.random.uniform(k2, (3 * emb_size,), jnp.float32, -s, s),
        "w_proj": jax.random.uniform(k3, (emb_size, emb_size),
                                     jnp.float32, -s, s),
        "b_proj": jax.random.uniform(k4, (emb_size,), jnp.float32, -s, s),
    }


def prepare_params(params, num_heads, dtype=None):
    """One-time qkv-weight column permutation + split (outside the hot path).

    Torch/einops layout has column index h*(3D) + d*3 + qkv ('(h d qkv)', qkv
    innermost).  We reorder to qkv*E + h*D + d and split into a q projection
    (E cols) and a kv projection (2E cols), so the kernels slice contiguous
    head-major slabs directly.  Optionally cast to `dtype` (e.g. bf16) so the
    MXU runs at its full bf16 rate with f32 accumulation.
    """
    e3 = params["b_qkv"].shape[0]
    E = e3 // 3
    D = E // num_heads
    c = jnp.arange(e3)
    qkv_idx = c // E
    h = (c % E) // D
    d = c % D
    perm = h * (3 * D) + d * 3 + qkv_idx
    w = params["w_qkv"][:, perm]
    b = params["b_qkv"][perm]
    out = {
        "w_q": w[:, :E], "b_q": b[:E],
        "w_kv": w[:, E:], "b_kv": b[E:],
        "w_proj": params["w_proj"], "b_proj": params["b_proj"],
    }
    if dtype is not None:
        out = {k_: v_.astype(dtype) for k_, v_ in out.items()}
    return out


# Pure-JAX reference (torch layout / einops split) for a correctness check.
def _reference(x, params, num_heads):
    B, N, E = x.shape
    D = E // num_heads
    qkv = x.reshape(B * N, E) @ params["w_qkv"] + params["b_qkv"]
    qkv = qkv.reshape(B, N, num_heads, D, 3)
    q = jnp.transpose(qkv[..., 0], (0, 2, 1, 3))
    k = jnp.transpose(qkv[..., 1], (0, 2, 1, 3))
    v = jnp.transpose(qkv[..., 2], (0, 2, 1, 3))
    energy = jnp.einsum("bhqd,bhkd->bhqk", q, k)
    att = jax.nn.softmax(energy, axis=-1) / (E ** 0.5)
    out = jnp.einsum("bhal,bhlv->bhav", att, v)
    out = jnp.transpose(out, (0, 2, 1, 3)).reshape(B * N, E)
    out = out @ params["w_proj"] + params["b_proj"]
    return out.reshape(B, N, E)


if __name__ == "__main__":
    # Small shapes consistent with the module: emb_size divisible by num_heads.
    B, N, E, H = 2, 8, 32, 4       # head_dim = 8

    key = jax.random.PRNGKey(0)
    kx, kp = jax.random.split(key)
    x = jax.random.normal(kx, (B, N, E), dtype=jnp.float32)
    params = init_params(kp, E)                       # torch '(h d qkv)' layout

    fwd = jax.jit(functools.partial(multi_head_attention, num_heads=H))
    y_ref = _reference(x, params, num_heads=H)

    # f32 operand path (tolerance 2e-3 because of the approx EUP reciprocal).
    pparams_f32 = prepare_params(params, num_heads=H)
    y = jax.block_until_ready(fwd(x, pparams_f32))
    assert y.shape == (B, N, E)
    assert jnp.allclose(y, y_ref, atol=2e-3, rtol=2e-3), \
        float(jnp.max(jnp.abs(y - y_ref)))

    # bf16 MXU-operand path (looser tolerance; accumulation stays f32).
    pparams_bf16 = prepare_params(params, num_heads=H, dtype=jnp.bfloat16)
    y_bf = jax.block_until_ready(fwd(x, pparams_bf16))
    assert y_bf.shape == (B, N, E)
    assert jnp.allclose(y_bf.astype(jnp.float32), y_ref, atol=5e-2, rtol=5e-2), \
        float(jnp.max(jnp.abs(y_bf.astype(jnp.float32) - y_ref)))

    print("KERNEL_OK")
</pallas_src>

<mosaic_0001>
module attributes {stable_mosaic.version = 11 : i64} {
  func.func @_linear_fullk_kernel(%arg0: i32, %arg1: i32, %arg2: memref<16x32xf32, #tpu.memory_space<vmem>>, %arg3: memref<32x64xf32, #tpu.memory_space<vmem>>, %arg4: memref<1x64xf32, #tpu.memory_space<vmem>>, %arg5: memref<16x64xf32, #tpu.memory_space<vmem>>) attributes {dimension_semantics = [#tpu.dimension_semantics<parallel>, #tpu.dimension_semantics<parallel>], iteration_bounds = array<i64: 1, 1>, scalar_prefetch = 0 : i64, scratch_operands = 0 : i64, tpu.core_type = #tpu.core_type<tc>, window_params = [{transform_indices = @transform_0, window_bounds = array<i64: 16, 32>}, {transform_indices = @transform_1, window_bounds = array<i64: 32, 64>}, {transform_indices = @transform_2, window_bounds = array<i64: 1, 64>}, {transform_indices = @transform_3, window_bounds = array<i64: 16, 64>}]} {
    %c0 = arith.constant 0 : index
    %c0_0 = arith.constant 0 : index
    %0 = vector.load %arg2[%c0, %c0_0] : memref<16x32xf32, #tpu.memory_space<vmem>>, vector<16x32xf32>
    %c0_1 = arith.constant 0 : index
    %c0_2 = arith.constant 0 : index
    %1 = vector.load %arg3[%c0_1, %c0_2] : memref<32x64xf32, #tpu.memory_space<vmem>>, vector<32x64xf32>
    %cst = arith.constant dense<0.000000e+00> : vector<16x64xf32>
    %2 = tpu.matmul %0, %1, %cst {dimension_numbers = #tpu.dot_dimension_numbers<[1], [0], [0], [1], [0, 0, 1, 1], [], []>} : vector<16x32xf32>, vector<32x64xf32>, vector<16x64xf32> -> vector<16x64xf32>
    %c0_3 = arith.constant 0 : index
    %c0_4 = arith.constant 0 : index
    %3 = vector.load %arg4[%c0_3, %c0_4] : memref<1x64xf32, #tpu.memory_space<vmem>>, vector<1x64xf32>
    %4 = vector.broadcast %3 : vector<1x64xf32> to vector<16x64xf32>
    %5 = arith.addf %2, %4 : vector<16x64xf32>
    %c0_5 = arith.constant 0 : index
    %c0_6 = arith.constant 0 : index
    %6 = vector.load %arg5[%c0_5, %c0_6] : memref<16x64xf32, #tpu.memory_space<vmem>>, vector<16x64xf32>
    tpu.vector_store %arg5[%c0_5, %c0_6], %5 {strides = array<i32>} : memref<16x64xf32, #tpu.memory_space<vmem>>, vector<16x64xf32>,
    return
  }
  func.func @transform_0(%arg0: i32, %arg1: i32) -> (i32, i32) {
    %c0_i32 = arith.constant 0 : i32
    %c0_i32_0 = arith.constant 0 : i32
    return %arg0, %c0_i32 : i32, i32
  }
  func.func @transform_1(%arg0: i32, %arg1: i32) -> (i32, i32) {
    %c0_i32 = arith.constant 0 : i32
    %c0_i32_0 = arith.constant 0 : i32
    return %c0_i32, %arg1 : i32, i32
  }
  func.func @transform_2(%arg0: i32, %arg1: i32) -> (i32, i32) {
    %c0_i32 = arith.constant 0 : i32
    %c0_i32_0 = arith.constant 0 : i32
    return %c0_i32, %arg1 : i32, i32
  }
  func.func @transform_3(%arg0: i32, %arg1: i32) -> (i32, i32) {
    %c0_i32 = arith.constant 0 : i32
    return %arg0, %arg1 : i32, i32
  }
}

module attributes {stable_mosaic.version = 11 : i64} {
  func.func @_linear_fullk_kernel(%arg0: i32, %arg1: i32, %arg2: memref<16x32xf32, #tpu.memory_space<vmem>>, %arg3: memref<32x32xf32, #tpu.memory_space<vmem>>, %arg4: memref<1x32xf32, #tpu.memory_space<vmem>>, %arg5: memref<16x32xf32, #tpu.memory_space<vmem>>) attributes {dimension_semantics = [#tpu.dimension_semantics<parallel>, #tpu.dimension_semantics<parallel>], iteration_bounds = array<i64: 1, 1>, scalar_prefetch = 0 : i64, scratch_operands = 0 : i64, tpu.core_type = #tpu.core_type<tc>, window_params = [{transform_indices = @transform_0, window_bounds = array<i64: 16, 32>}, {transform_indices = @transform_1, window_bounds = array<i64: 32, 32>}, {transform_indices = @transform_2, window_bounds = array<i64: 1, 32>}, {transform_indices = @transform_3, window_bounds = array<i64: 16, 32>}]} {
    %c0 = arith.constant 0 : index
    %c0_0 = arith.constant 0 : index
    %0 = vector.load %arg2[%c0, %c0_0] : memref<16x32xf32, #tpu.memory_space<vmem>>, vector<16x32xf32>
    %c0_1 = arith.constant 0 : index
    %c0_2 = arith.constant 0 : index
    %1 = vector.load %arg3[%c0_1, %c0_2] : memref<32x32xf32, #tpu.memory_space<vmem>>, vector<32x32xf32>
    %cst = arith.constant dense<0.000000e+00> : vector<16x32xf32>
    %2 = tpu.matmul %0, %1, %cst {dimension_numbers = #tpu.dot_dimension_numbers<[1], [0], [0], [1], [0, 0, 1, 1], [], []>} : vector<16x32xf32>, vector<32x32xf32>, vector<16x32xf32> -> vector<16x32xf32>
    %c0_3 = arith.constant 0 : index
    %c0_4 = arith.constant 0 : index
    %3 = vector.load %arg4[%c0_3, %c0_4] : memref<1x32xf32, #tpu.memory_space<vmem>>, vector<1x32xf32>
    %4 = vector.broadcast %3 : vector<1x32xf32> to vector<16x32xf32>
    %5 = arith.addf %2, %4 : vector<16x32xf32>
    %c0_5 = arith.constant 0 : index
    %c0_6 = arith.constant 0 : index
    %6 = vector.load %arg5[%c0_5, %c0_6] : memref<16x32xf32, #tpu.memory_space<vmem>>, vector<16x32xf32>
    tpu.vector_store %arg5[%c0_5, %c0_6], %5 {strides = array<i32>} : memref<16x32xf32, #tpu.memory_space<vmem>>, vector<16x32xf32>,
    return
  }
  func.func @transform_0(%arg0: i32, %arg1: i32) -> (i32, i32) {
    %c0_i32 = arith.constant 0 : i32
    %c0_i32_0 = arith.constant 0 : i32
    return %arg0, %c0_i32 : i32, i32
  }
  func.func @transform_1(%arg0: i32, %arg1: i32) -> (i32, i32) {
    %c0_i32 = arith.constant 0 : i32
    %c0_i32_0 = arith.constant 0 : i32
    return %c0_i32, %arg1 : i32, i32
  }
  func.func @transform_2(%arg0: i32, %arg1: i32) -> (i32, i32) {
    %c0_i32 = arith.constant 0 : i32
    %c0_i32_0 = arith.constant 0 : i32
    return %c0_i32, %arg1 : i32, i32
  }
  func.func @transform_3(%arg0: i32, %arg1: i32) -> (i32, i32) {
    %c0_i32 = arith.constant 0 : i32
    return %arg0, %arg1 : i32, i32
  }
}

module attributes {stable_mosaic.version = 11 : i64} {
  func.func @_attention_kernel(%arg0: i32, %arg1: i32, %arg2: memref<1x8x32xf32, #tpu.memory_space<vmem>>, %arg3: memref<1x8x64xf32, #tpu.memory_space<vmem>>, %arg4: memref<1x8x32xf32, #tpu.memory_space<vmem>>) attributes {dimension_semantics = [#tpu.dimension_semantics<parallel>, #tpu.dimension_semantics<parallel>], iteration_bounds = array<i64: 2, 1>, scalar_prefetch = 0 : i64, scratch_operands = 0 : i64, tpu.core_type = #tpu.core_type<tc>, window_params = [{transform_indices = @transform_0, window_bounds = array<i64: 1, 8, 32>}, {transform_indices = @transform_1, window_bounds = array<i64: 1, 8, 64>}, {transform_indices = @transform_2, window_bounds = array<i64: 1, 8, 32>}]} {
    %c0 = arith.constant 0 : index
    %c0_0 = arith.constant 0 : index
    %c0_1 = arith.constant 0 : index
    %0 = vector.load %arg2[%c0, %c0_0, %c0_1] : memref<1x8x32xf32, #tpu.memory_space<vmem>>, vector<1x8x32xf32>
    %1 = vector.shape_cast %0 : vector<1x8x32xf32> to vector<8x32xf32>
    %c0_2 = arith.constant 0 : index
    %c0_3 = arith.constant 0 : index
    %c0_4 = arith.constant 0 : index
    %2 = vector.load %arg3[%c0_2, %c0_3, %c0_4] : memref<1x8x64xf32, #tpu.memory_space<vmem>>, vector<1x8x64xf32>
    %3 = vector.shape_cast %2 : vector<1x8x64xf32> to vector<8x64xf32>
    %4 = vector.extract_strided_slice %1 {offsets = [0, 0], sizes = [8, 8], strides = [1, 1]} : vector<8x32xf32> to vector<8x8xf32>
    %5 = vector.extract_strided_slice %3 {offsets = [0, 0], sizes = [8, 8], strides = [1, 1]} : vector<8x64xf32> to vector<8x8xf32>
    %6 = vector.extract_strided_slice %3 {offsets = [0, 32], sizes = [8, 8], strides = [1, 1]} : vector<8x64xf32> to vector<8x8xf32>
    %cst = arith.constant dense<0.000000e+00> : vector<8x8xf32>
    %7 = tpu.matmul %4, %5, %cst {dimension_numbers = #tpu.dot_dimension_numbers<[1], [1], [0], [0], [0, 0, 1, 0], [], []>} : vector<8x8xf32>, vector<8x8xf32>, vector<8x8xf32> -> vector<8x8xf32>
    %cst_5 = arith.constant dense<0xFF800000> : vector<8xf32>
    %8 = vector.multi_reduction <maximumf>, %7, %cst_5 [1] : vector<8x8xf32> to vector<8xf32>
    %9 = vector.shape_cast %8 : vector<8xf32> to vector<8x1xf32>
    %10 = vector.broadcast %9 : vector<8x1xf32> to vector<8x8xf32>
    %11 = arith.subf %7, %10 : vector<8x8xf32>
    %12 = math.exp %11 : vector<8x8xf32>
    %cst_6 = arith.constant dense<0.000000e+00> : vector<8xf32>
    %13 = vector.multi_reduction <add>, %12, %cst_6 [1] : vector<8x8xf32> to vector<8xf32>
    %14 = vector.shape_cast %13 : vector<8xf32> to vector<8x1xf32>
    %cst_7 = arith.constant dense<0.000000e+00> : vector<8x8xf32>
    %15 = tpu.matmul %12, %6, %cst_7 {dimension_numbers = #tpu.dot_dimension_numbers<[1], [0], [0], [1], [0, 0, 1, 1], [], []>} : vector<8x8xf32>, vector<8x8xf32>, vector<8x8xf32> -> vector<8x8xf32>
    %cst_8 = arith.constant 5.65685415 : f32
    %16 = vector.broadcast %cst_8 : f32 to vector<8x1xf32>
    %17 = arith.mulf %14, %16 : vector<8x1xf32>
    %18 = tpu.reciprocal %17 {approx = true} : vector<8x1xf32> -> vector<8x1xf32>
    %19 = vector.broadcast %18 : vector<8x1xf32> to vector<8x8xf32>
    %20 = arith.mulf %15, %19 : vector<8x8xf32>
    %21 = vector.extract_strided_slice %1 {offsets = [0, 8], sizes = [8, 8], strides = [1, 1]} : vector<8x32xf32> to vector<8x8xf32>
    %22 = vector.extract_strided_slice %3 {offsets = [0, 8], sizes = [8, 8], strides = [1, 1]} : vector<8x64xf32> to vector<8x8xf32>
    %23 = vector.extract_strided_slice %3 {offsets = [0, 40], sizes = [8, 8], strides = [1, 1]} : vector<8x64xf32> to vector<8x8xf32>
    %cst_9 = arith.constant dense<0.000000e+00> : vector<8x8xf32>
    %24 = tpu.matmul %21, %22, %cst_9 {dimension_numbers = #tpu.dot_dimension_numbers<[1], [1], [0], [0], [0, 0, 1, 0], [], []>} : vector<8x8xf32>, vector<8x8xf32>, vector<8x8xf32> -> vector<8x8xf32>
    %cst_10 = arith.constant dense<0xFF800000> : vector<8xf32>
    %25 = vector.multi_reduction <maximumf>, %24, %cst_10 [1] : vector<8x8xf32> to vector<8xf32>
    %26 = vector.shape_cast %25 : vector<8xf32> to vector<8x1xf32>
    %27 = vector.broadcast %26 : vector<8x1xf32> to vector<8x8xf32>
    %28 = arith.subf %24, %27 : vector<8x8xf32>
    %29 = math.exp %28 : vector<8x8xf32>
    %cst_11 = arith.constant dense<0.000000e+00> : vector<8xf32>
    %30 = vector.multi_reduction <add>, %29, %cst_11 [1] : vector<8x8xf32> to vector<8xf32>
    %31 = vector.shape_cast %30 : vector<8xf32> to vector<8x1xf32>
    %cst_12 = arith.constant dense<0.000000e+00> : vector<8x8xf32>
    %32 = tpu.matmul %29, %23, %cst_12 {dimension_numbers = #tpu.dot_dimension_numbers<[1], [0], [0], [1], [0, 0, 1, 1], [], []>} : vector<8x8xf32>, vector<8x8xf32>, vector<8x8xf32> -> vector<8x8xf32>
    %cst_13 = arith.constant 5.65685415 : f32
    %33 = vector.broadcast %cst_13 : f32 to vector<8x1xf32>
    %34 = arith.mulf %31, %33 : vector<8x1xf32>
    %35 = tpu.reciprocal %34 {approx = true} : vector<8x1xf32> -> vector<8x1xf32>
    %36 = vector.broadcast %35 : vector<8x1xf32> to vector<8x8xf32>
    %37 = arith.mulf %32, %36 : vector<8x8xf32>
    %38 = vector.extract_strided_slice %1 {offsets = [0, 16], sizes = [8, 8], strides = [1, 1]} : vector<8x32xf32> to vector<8x8xf32>
    %39 = vector.extract_strided_slice %3 {offsets = [0, 16], sizes = [8, 8], strides = [1, 1]} : vector<8x64xf32> to vector<8x8xf32>
    %40 = vector.extract_strided_slice %3 {offsets = [0, 48], sizes = [8, 8], strides = [1, 1]} : vector<8x64xf32> to vector<8x8xf32>
    %cst_14 = arith.constant dense<0.000000e+00> : vector<8x8xf32>
    %41 = tpu.matmul %38, %39, %cst_14 {dimension_numbers = #tpu.dot_dimension_numbers<[1], [1], [0], [0], [0, 0, 1, 0], [], []>} : vector<8x8xf32>, vector<8x8xf32>, vector<8x8xf32> -> vector<8x8xf32>
    %cst_15 = arith.constant dense<0xFF800000> : vector<8xf32>
    %42 = vector.multi_reduction <maximumf>, %41, %cst_15 [1] : vector<8x8xf32> to vector<8xf32>
    %43 = vector.shape_cast %42 : vector<8xf32> to vector<8x1xf32>
    %44 = vector.broadcast %43 : vector<8x1xf32> to vector<8x8xf32>
    %45 = arith.subf %41, %44 : vector<8x8xf32>
    %46 = math.exp %45 : vector<8x8xf32>
    %cst_16 = arith.constant dense<0.000000e+00> : vector<8xf32>
    %47 = vector.multi_reduction <add>, %46, %cst_16 [1] : vector<8x8xf32> to vector<8xf32>
    %48 = vector.shape_cast %47 : vector<8xf32> to vector<8x1xf32>
    %cst_17 = arith.constant dense<0.000000e+00> : vector<8x8xf32>
    %49 = tpu.matmul %46, %40, %cst_17 {dimension_numbers = #tpu.dot_dimension_numbers<[1], [0], [0], [1], [0, 0, 1, 1], [], []>} : vector<8x8xf32>, vector<8x8xf32>, vector<8x8xf32> -> vector<8x8xf32>
    %cst_18 = arith.constant 5.65685415 : f32
    %50 = vector.broadcast %cst_18 : f32 to vector<8x1xf32>
    %51 = arith.mulf %48, %50 : vector<8x1xf32>
    %52 = tpu.reciprocal %51 {approx = true} : vector<8x1xf32> -> vector<8x1xf32>
    %53 = vector.broadcast %52 : vector<8x1xf32> to vector<8x8xf32>
    %54 = arith.mulf %49, %53 : vector<8x8xf32>
    %55 = vector.extract_strided_slice %1 {offsets = [0, 24], sizes = [8, 8], strides = [1, 1]} : vector<8x32xf32> to vector<8x8xf32>
    %56 = vector.extract_strided_slice %3 {offsets = [0, 24], sizes = [8, 8], strides = [1, 1]} : vector<8x64xf32> to vector<8x8xf32>
    %57 = vector.extract_strided_slice %3 {offsets = [0, 56], sizes = [8, 8], strides = [1, 1]} : vector<8x64xf32> to vector<8x8xf32>
    %cst_19 = arith.constant dense<0.000000e+00> : vector<8x8xf32>
    %58 = tpu.matmul %55, %56, %cst_19 {dimension_numbers = #tpu.dot_dimension_numbers<[1], [1], [0], [0], [0, 0, 1, 0], [], []>} : vector<8x8xf32>, vector<8x8xf32>, vector<8x8xf32> -> vector<8x8xf32>
    %cst_20 = arith.constant dense<0xFF800000> : vector<8xf32>
    %59 = vector.multi_reduction <maximumf>, %58, %cst_20 [1] : vector<8x8xf32> to vector<8xf32>
    %60 = vector.shape_cast %59 : vector<8xf32> to vector<8x1xf32>
    %61 = vector.broadcast %60 : vector<8x1xf32> to vector<8x8xf32>
    %62 = arith.subf %58, %61 : vector<8x8xf32>
    %63 = math.exp %62 : vector<8x8xf32>
    %cst_21 = arith.constant dense<0.000000e+00> : vector<8xf32>
    %64 = vector.multi_reduction <add>, %63, %cst_21 [1] : vector<8x8xf32> to vector<8xf32>
    %65 = vector.shape_cast %64 : vector<8xf32> to vector<8x1xf32>
    %cst_22 = arith.constant dense<0.000000e+00> : vector<8x8xf32>
    %66 = tpu.matmul %63, %57, %cst_22 {dimension_numbers = #tpu.dot_dimension_numbers<[1], [0], [0], [1], [0, 0, 1, 1], [], []>} : vector<8x8xf32>, vector<8x8xf32>, vector<8x8xf32> -> vector<8x8xf32>
    %cst_23 = arith.constant 5.65685415 : f32
    %67 = vector.broadcast %cst_23 : f32 to vector<8x1xf32>
    %68 = arith.mulf %65, %67 : vector<8x1xf32>
    %69 = tpu.reciprocal %68 {approx = true} : vector<8x1xf32> -> vector<8x1xf32>
    %70 = vector.broadcast %69 : vector<8x1xf32> to vector<8x8xf32>
    %71 = arith.mulf %66, %70 : vector<8x8xf32>
    %72 = tpu.concatenate %20, %37, %54, %71 in 1 : vector<8x8xf32>, vector<8x8xf32>, vector<8x8xf32>, vector<8x8xf32> -> vector<8x32xf32>
    %c0_24 = arith.constant 0 : index
    %c0_25 = arith.constant 0 : index
    %c0_26 = arith.constant 0 : index
    %73 = vector.load %arg4[%c0_24, %c0_25, %c0_26] : memref<1x8x32xf32, #tpu.memory_space<vmem>>, vector<1x8x32xf32>
    %74 = vector.shape_cast %73 : vector<1x8x32xf32> to vector<8x32xf32>
    %75 = vector.shape_cast %72 : vector<8x32xf32> to vector<1x8x32xf32>
    tpu.vector_store %arg4[%c0_24, %c0_25, %c0_26], %75 {strides = array<i32>} : memref<1x8x32xf32, #tpu.memory_space<vmem>>, vector<1x8x32xf32>,
    return
  }
  func.func @transform_0(%arg0: i32, %arg1: i32) -> (i32, i32, i32) {
    %c0_i32 = arith.constant 0 : i32
    %c0_i32_0 = arith.constant 0 : i32
    return %arg0, %arg1, %c0_i32 : i32, i32, i32
  }
  func.func @transform_1(%arg0: i32, %arg1: i32) -> (i32, i32, i32) {
    %c0_i32 = arith.constant 0 : i32
    %c0_i32_0 = arith.constant 0 : i32
    %c0_i32_1 = arith.constant 0 : i32
    return %arg0, %c0_i32, %c0_i32_0 : i32, i32, i32
  }
  func.func @transform_2(%arg0: i32, %arg1: i32) -> (i32, i32, i32) {
    %c0_i32 = arith.constant 0 : i32
    %c0_i32_0 = arith.constant 0 : i32
    return %arg0, %arg1, %c0_i32 : i32, i32, i32
  }
}

</mosaic_0001>

<llo_original>
// kernel: multi_head_attention.5
$region0: #{multi_head_attention.5}
  #allocation0 [shape = 'u32[]', space=smem, size = 0x4, offset = 0x4, fixed_abs, tag = 'smem constant byte address 0x4 - core index']
  #allocation1 [shape = 'u32[144,128]{1,0:T(1,128)}', space=vmem, size = 0x12000, scoped, tag = 'internal scratch']
  %s0 = inlined_call_operand.hbm [shape: f32[16,32], index: 0, kind: input, shape index: {}]
  %s1 = inlined_call_operand.hbm [shape: f32[32,64], index: 1, kind: input, shape index: {}]
  %s2 = inlined_call_operand.hbm [shape: f32[1,64], index: 2, kind: input, shape index: {}]
  %s3 = inlined_call_operand.hbm [shape: f32[16,64], index: 3, kind: output, shape index: {}]
  %s4 = sld [smem:[#allocation0]]
  $region34: #{multi_head_attention.5} parent=0
    _
  %s6 = ssub.s32 1, %s4
  %s7 = scalar_select 0, %s6, %s4
  $region1: #{multi_head_attention.5} parent=0
    #allocation2 [shape = 'u8[8192]{0}', space=vmem, size = 0x2000, scoped, tag = 'input window, operand 0, single buffered']
    #allocation3 [shape = 's32[1]{0}', space=sflag, size = 0x4, scoped, tag = 'scoped memory for multi_head_attention.5']
    #allocation4 [shape = 's32[1]{0}', space=sflag, size = 0x4, scoped, tag = 'scoped memory for multi_head_attention.5']
    #allocation5 [shape = 'u8[16384]{0}', space=vmem, size = 0x4000, scoped, tag = 'input window, operand 1, single buffered']
    #allocation6 [shape = 's32[1]{0}', space=sflag, size = 0x4, scoped, tag = 'scoped memory for multi_head_attention.5']
    #allocation7 [shape = 'u8[512]{0}', space=vmem, size = 0x400, scoped, tag = 'input window, operand 2, single buffered']
    #allocation8 [shape = 'u8[8192]{0}', space=vmem, size = 0x2000, scoped, tag = 'output window, operand 0, single buffered']
    %8 = vsyncpa [#allocation3], 0
    %9 = vsyncpa [#allocation6], 0
    %10 = vsyncpa [#allocation4], 0
    // Predicated region
    $region2: #{multi_head_attention.5} parent=1 // pred_check
      _
    $region3: #{multi_head_attention.5} parent=1 // pred_check_branch
      %12 = sbr.rel (0) target = $region5
    $region4: #{multi_head_attention.5} parent=1 // pred_region
      %s14 = ssub.s32 256, 256
      %15 = vsyncadd [#allocation3], %s14
      %s16 = sshll.u32 [#allocation2], 4
      %s17 = int_to_ptr.vmem [resolvable:$true] %s16
      %22 = dma.hbm_to_vmem [thread:$0]  %s0, 256, %s17, [#allocation3], 128, 128, 8
    $region5: #{multi_head_attention.5} parent=1 // pred_fallthru
      _
    // Predicated region
    $region6: #{multi_head_attention.5} parent=1 // pred_check
      _
    $region7: #{multi_head_attention.5} parent=1 // pred_check_branch
      %24 = sbr.rel (0) target = $region9
    $region8: #{multi_head_attention.5} parent=1 // pred_region
      %s26 = ssub.s32 512, 512
      %27 = vsyncadd [#allocation6], %s26
      %s28 = sshll.u32 [#allocation5], 4
      %s29 = int_to_ptr.vmem [resolvable:$true] %s28
      %34 = dma.hbm_to_vmem [thread:$0]  %s1, 512, %s29, [#allocation6], 128, 128, 8
    $region9: #{multi_head_attention.5} parent=1 // pred_fallthru
      _
    // Predicated region
    $region10: #{multi_head_attention.5} parent=1 // pred_check
      _
    $region11: #{multi_head_attention.5} parent=1 // pred_check_branch
      %36 = sbr.rel (0) target = $region13
    $region12: #{multi_head_attention.5} parent=1 // pred_region
      %s38 = ssub.s32 16, 16
      %39 = vsyncadd [#allocation6], %s38
      %s41 = sshll.u32 [#allocation7], 4
      %s42 = int_to_ptr.vmem [resolvable:$true] %s41
      %44 = dma.hbm_to_vmem [thread:$0]  %s2, 16, %s42, [#allocation6]
    $region13: #{multi_head_attention.5} parent=1 // pred_fallthru
      _
    // Predicated region
    $region14: #{multi_head_attention.5} parent=1 // pred_check
      _
    $region15: #{multi_head_attention.5} parent=1 // pred_check_branch
      %46 = sbr.rel (0) target = $region17
    $region16: #{multi_head_attention.5} parent=1 // pred_region
      %47 = dma.done [#allocation3], 256
    $region17: #{multi_head_attention.5} parent=1 // pred_fallthru
      _
    // Predicated region
    $region18: #{multi_head_attention.5} parent=1 // pred_check
      _
    $region19: #{multi_head_attention.5} parent=1 // pred_check_branch
      %49 = sbr.rel (0) target = $region21
    $region20: #{multi_head_attention.5} parent=1 // pred_region
      %50 = dma.done [#allocation6], 512
    $region21: #{multi_head_attention.5} parent=1 // pred_fallthru
      _
    // Predicated region
    $region22: #{multi_head_attention.5} parent=1 // pred_check
      _
    $region23: #{multi_head_attention.5} parent=1 // pred_check_branch
      %52 = sbr.rel (0) target = $region25
    $region24: #{multi_head_attention.5} parent=1 // pred_region
      %53 = dma.done [#allocation6], 16
    $region25: #{multi_head_attention.5} parent=1 // pred_fallthru
      _
    %v54 = vld [vmem:[#allocation2] sm:$0xff]
    %v55 = vld [vmem:[#allocation2 + $0x8] sm:$0xff]
    %v56 = vld [vmem:[#allocation5] sm:$0xff]
    %v57 = vld [vmem:[#allocation5 + $0x8] sm:$0xff]
    %v58 = vld [vmem:[#allocation5 + $0x10] sm:$0xff]
    %v59 = vld [vmem:[#allocation5 + $0x18] sm:$0xff]
    %v60 = vld [vmem:[#allocation7] sm:$0x1]
    %v62 = vlaneseq
    %v63 = vshrl.u32 %v62, 7
    %v64 = vsub.s32 0, %v63
    %v65 = vrot.slane %v60, %v64
    %vm67 = vcmask 261120
    %v69 = vsel %vm67, %v54, 0
    %v72 = vsel %vm67, %v55, 0
    %74 = vmatprep.subr.mxu0 0.0
    %75 = vmatpush1.msra.mxu0 %v56
    %76 = vmatprep.subr.mxu0 0.0
    %77 = vmatpush1.msra.mxu0 %v57
    %78 = vmatprep.subr.mxu0 0.0
    %79 = vmatpush1.msra.mxu0 %v58
    %80 = vmatprep.subr.mxu0 0.0
    %81 = vmatpush1.msra.mxu0 %v59
    %82 = vmatprep.subr.mxu0 0.0
    %83 = vmatpush1.msra.mxu0 0.0
    %84 = vmatprep.subr.mxu0 0.0
    %85 = vmatpush1.msra.mxu0 0.0
    %86 = vmatprep.subr.mxu0 0.0
    %87 = vmatpush1.msra.mxu0 0.0
    %88 = vmatprep.subr.mxu0 0.0
    %89 = vmatpush1.msra.mxu0 0.0
    %90 = vmatprep.subr.mxu0 0.0
    %91 = vmatpush1.msra.mxu0 0.0
    %92 = vmatprep.subr.mxu0 0.0
    %93 = vmatpush1.msra.mxu0 0.0
    %94 = vmatprep.subr.mxu0 0.0
    %95 = vmatpush1.msra.mxu0 0.0
    %96 = vmatprep.subr.mxu0 0.0
    %97 = vmatpush1.msra.mxu0 0.0
    %98 = vmatprep.subr.mxu0 0.0
    %99 = vmatpush1.msra.mxu0 0.0
    %100 = vmatprep.subr.mxu0 0.0
    %101 = vmatpush1.msra.mxu0 0.0
    %102 = vmatprep.subr.mxu0 0.0
    %103 = vmatpush1.msra.mxu0 0.0
    %104 = vmatprep.subr.mxu0 0.0
    %105 = vmatpush1.msra.mxu0 0.0
    %106 = vmatprep.subr.mxu0 0.0
    %107 = vmatpush1.msra.mxu0 0.0
    %108 = vmatprep.subr.mxu0 0.0
    %109 = vmatpush1.msra.mxu0 0.0
    %110 = vmatprep.subr.mxu0 0.0
    %111 = vmatpush1.msra.mxu0 0.0
    %112 = vmatprep.subr.mxu0 0.0
    %113 = vmatpush1.msra.mxu0 0.0
    %114 = vmatprep.subr.mxu0 0.0
    %115 = vmatpush1.msra.mxu0 0.0
    %116 = vmatprep.subr.mxu0 0.0
    %117 = vmatpush1.msra.mxu0 0.0
    %118 = vmatprep.subr.mxu0 0.0
    %119 = vmatpush1.msra.mxu0 0.0
    %120 = vmatprep.subr.mxu0 0.0
    %121 = vmatpush1.msra.mxu0 0.0
    %122 = vmatprep.subr.mxu0 0.0
    %123 = vmatpush1.msra.mxu0 0.0
    %124 = vmatprep.subr.mxu0 0.0
    %125 = vmatpush1.msra.mxu0 0.0
    %126 = vmatprep.subr.mxu0 0.0
    %127 = vmatpush1.msra.mxu0 0.0
    %128 = vmatprep.subr.mxu0 0.0
    %129 = vmatpush1.msra.mxu0 0.0
    %130 = vmatprep.subr.mxu0 0.0
    %131 = vmatpush1.msra.mxu0 0.0
    %132 = vmatprep.subr.mxu0 0.0
    %133 = vmatpush1.msra.mxu0 0.0
    %134 = vmatprep.subr.mxu0 0.0
    %135 = vmatpush1.msra.mxu0 0.0
    %136 = vmatprep.subr.mxu0 0.0
    %137 = vmatpush1.msra.mxu0 0.0
    %138 = vmatprep.mubr.f32.mxu0 0.0
    %139 = vmatmul.mubr.f32.gmra.mrb[0].mxu0 %v69
    %v140 = vpop.f32.mrb[0].mxu0
    %v141 = vadd.f32 %v65, %v140
    %v142 = vpop.f32.mrb[0].mxu0
    %143 = vmatprep.mubr.f32.mxu0 0.0
    %144 = vmatmul.mubr.f32.gmra.mrb[0].mxu0 %v72
    %v145 = vpop.f32.mrb[0].mxu0
    %v146 = vadd.f32 %v65, %v145
    %v147 = vpop.f32.mrb[0].mxu0
    %148 = vdwg.mxu0
    %vm149 = vcmask 523264
    %150 = vst.msk [vmem:[#allocation8] sm:$0xff] %vm149, %v141
    %151 = vst.msk [vmem:[#allocation8 + $0x8] sm:$0xff] %vm149, %v146
    // Predicated region
    $region26: #{multi_head_attention.5} parent=1 // pred_check
      _
    $region27: #{multi_head_attention.5} parent=1 // pred_check_branch
      %153 = sbr.rel (0) target = $region29
    $region28: #{multi_head_attention.5} parent=1 // pred_region
      %s155 = ssub.s32 256, 256
      %156 = vsyncadd [#allocation4], %s155
      %s157 = sshll.u32 [#allocation8], 4
      %s158 = int_to_ptr.vmem [resolvable:$true] %s157
      %163 = dma.vmem_to_hbm [thread:$0]  %s158, 256, %s3, [#allocation4], 128, 128, 8
    $region29: #{multi_head_attention.5} parent=1 // pred_fallthru
      _
    // Predicated region
    $region30: #{multi_head_attention.5} parent=1 // pred_check
      _
    $region31: #{multi_head_attention.5} parent=1 // pred_check_branch
      %165 = sbr.rel (0) target = $region33
    $region32: #{multi_head_attention.5} parent=1 // pred_region
      %166 = dma.done [#allocation4], 256
    $region33: #{multi_head_attention.5} parent=1 // pred_fallthru
      _
    %167 = vsyncpa [#allocation3], 1
    %168 = vsyncpa [#allocation6], 1
    %169 = vsyncpa [#allocation4], 1

// kernel: multi_head_attention.4
$region0: #{multi_head_attention.4}
  #allocation0 [shape = 'u32[]', space=smem, size = 0x4, offset = 0x4, fixed_abs, tag = 'smem constant byte address 0x4 - core index']
  #allocation1 [shape = 'u32[144,128]{1,0:T(1,128)}', space=vmem, size = 0x12000, scoped, tag = 'internal scratch']
  %s0 = inlined_call_operand.hbm [shape: f32[16,32], index: 0, kind: input, shape index: {}]
  %s1 = inlined_call_operand.hbm [shape: f32[32,32], index: 1, kind: input, shape index: {}]
  %s2 = inlined_call_operand.hbm [shape: f32[1,32], index: 2, kind: input, shape index: {}]
  %s3 = inlined_call_operand.hbm [shape: f32[16,32], index: 3, kind: output, shape index: {}]
  %s4 = sld [smem:[#allocation0]]
  $region34: #{multi_head_attention.4} parent=0
    _
  %s6 = ssub.s32 1, %s4
  %s7 = scalar_select 0, %s6, %s4
  $region1: #{multi_head_attention.4} parent=0
    #allocation2 [shape = 'u8[8192]{0}', space=vmem, size = 0x2000, scoped, tag = 'input window, operand 0, single buffered']
    #allocation3 [shape = 's32[1]{0}', space=sflag, size = 0x4, scoped, tag = 'scoped memory for multi_head_attention.4']
    #allocation4 [shape = 's32[1]{0}', space=sflag, size = 0x4, scoped, tag = 'scoped memory for multi_head_attention.4']
    #allocation5 [shape = 'u8[16384]{0}', space=vmem, size = 0x4000, scoped, tag = 'input window, operand 1, single buffered']
    #allocation6 [shape = 's32[1]{0}', space=sflag, size = 0x4, scoped, tag = 'scoped memory for multi_head_attention.4']
    #allocation7 [shape = 'u8[512]{0}', space=vmem, size = 0x400, scoped, tag = 'input window, operand 2, single buffered']
    #allocation8 [shape = 'u8[8192]{0}', space=vmem, size = 0x2000, scoped, tag = 'output window, operand 0, single buffered']
    %8 = vsyncpa [#allocation3], 0
    %9 = vsyncpa [#allocation6], 0
    %10 = vsyncpa [#allocation4], 0
    // Predicated region
    $region2: #{multi_head_attention.4} parent=1 // pred_check
      _
    $region3: #{multi_head_attention.4} parent=1 // pred_check_branch
      %12 = sbr.rel (0) target = $region5
    $region4: #{multi_head_attention.4} parent=1 // pred_region
      %s14 = ssub.s32 256, 256
      %15 = vsyncadd [#allocation3], %s14
      %s16 = sshll.u32 [#allocation2], 4
      %s17 = int_to_ptr.vmem [resolvable:$true] %s16
      %22 = dma.hbm_to_vmem [thread:$0]  %s0, 256, %s17, [#allocation3], 128, 128, 8
    $region5: #{multi_head_attention.4} parent=1 // pred_fallthru
      _
    // Predicated region
    $region6: #{multi_head_attention.4} parent=1 // pred_check
      _
    $region7: #{multi_head_attention.4} parent=1 // pred_check_branch
      %24 = sbr.rel (0) target = $region9
    $region8: #{multi_head_attention.4} parent=1 // pred_region
      %s26 = ssub.s32 512, 512
      %27 = vsyncadd [#allocation6], %s26
      %s28 = sshll.u32 [#allocation5], 4
      %s29 = int_to_ptr.vmem [resolvable:$true] %s28
      %34 = dma.hbm_to_vmem [thread:$0]  %s1, 512, %s29, [#allocation6], 128, 128, 8
    $region9: #{multi_head_attention.4} parent=1 // pred_fallthru
      _
    // Predicated region
    $region10: #{multi_head_attention.4} parent=1 // pred_check
      _
    $region11: #{multi_head_attention.4} parent=1 // pred_check_branch
      %36 = sbr.rel (0) target = $region13
    $region12: #{multi_head_attention.4} parent=1 // pred_region
      %s38 = ssub.s32 16, 16
      %39 = vsyncadd [#allocation6], %s38
      %s41 = sshll.u32 [#allocation7], 4
      %s42 = int_to_ptr.vmem [resolvable:$true] %s41
      %44 = dma.hbm_to_vmem [thread:$0]  %s2, 16, %s42, [#allocation6]
    $region13: #{multi_head_attention.4} parent=1 // pred_fallthru
      _
    // Predicated region
    $region14: #{multi_head_attention.4} parent=1 // pred_check
      _
    $region15: #{multi_head_attention.4} parent=1 // pred_check_branch
      %46 = sbr.rel (0) target = $region17
    $region16: #{multi_head_attention.4} parent=1 // pred_region
      %47 = dma.done [#allocation3], 256
    $region17: #{multi_head_attention.4} parent=1 // pred_fallthru
      _
    // Predicated region
    $region18: #{multi_head_attention.4} parent=1 // pred_check
      _
    $region19: #{multi_head_attention.4} parent=1 // pred_check_branch
      %49 = sbr.rel (0) target = $region21
    $region20: #{multi_head_attention.4} parent=1 // pred_region
      %50 = dma.done [#allocation6], 512
    $region21: #{multi_head_attention.4} parent=1 // pred_fallthru
      _
    // Predicated region
    $region22: #{multi_head_attention.4} parent=1 // pred_check
      _
    $region23: #{multi_head_attention.4} parent=1 // pred_check_branch
      %52 = sbr.rel (0) target = $region25
    $region24: #{multi_head_attention.4} parent=1 // pred_region
      %53 = dma.done [#allocation6], 16
    $region25: #{multi_head_attention.4} parent=1 // pred_fallthru
      _
    %v54 = vld [vmem:[#allocation2] sm:$0xff]
    %v55 = vld [vmem:[#allocation2 + $0x8] sm:$0xff]
    %v56 = vld [vmem:[#allocation5] sm:$0xff]
    %v57 = vld [vmem:[#allocation5 + $0x8] sm:$0xff]
    %v58 = vld [vmem:[#allocation5 + $0x10] sm:$0xff]
    %v59 = vld [vmem:[#allocation5 + $0x18] sm:$0xff]
    %v60 = vld [vmem:[#allocation7] sm:$0x1]
    %v62 = vlaneseq
    %v63 = vshrl.u32 %v62, 7
    %v64 = vsub.s32 0, %v63
    %v65 = vrot.slane %v60, %v64
    %vm67 = vcmask 261120
    %v69 = vsel %vm67, %v54, 0
    %v72 = vsel %vm67, %v55, 0
    %74 = vmatprep.subr.mxu0 0.0
    %75 = vmatpush1.msra.mxu0 %v56
    %76 = vmatprep.subr.mxu0 0.0
    %77 = vmatpush1.msra.mxu0 %v57
    %78 = vmatprep.subr.mxu0 0.0
    %79 = vmatpush1.msra.mxu0 %v58
    %80 = vmatprep.subr.mxu0 0.0
    %81 = vmatpush1.msra.mxu0 %v59
    %82 = vmatprep.subr.mxu0 0.0
    %83 = vmatpush1.msra.mxu0 0.0
    %84 = vmatprep.subr.mxu0 0.0
    %85 = vmatpush1.msra.mxu0 0.0
    %86 = vmatprep.subr.mxu0 0.0
    %87 = vmatpush1.msra.mxu0 0.0
    %88 = vmatprep.subr.mxu0 0.0
    %89 = vmatpush1.msra.mxu0 0.0
    %90 = vmatprep.subr.mxu0 0.0
    %91 = vmatpush1.msra.mxu0 0.0
    %92 = vmatprep.subr.mxu0 0.0
    %93 = vmatpush1.msra.mxu0 0.0
    %94 = vmatprep.subr.mxu0 0.0
    %95 = vmatpush1.msra.mxu0 0.0
    %96 = vmatprep.subr.mxu0 0.0
    %97 = vmatpush1.msra.mxu0 0.0
    %98 = vmatprep.subr.mxu0 0.0
    %99 = vmatpush1.msra.mxu0 0.0
    %100 = vmatprep.subr.mxu0 0.0
    %101 = vmatpush1.msra.mxu0 0.0
    %102 = vmatprep.subr.mxu0 0.0
    %103 = vmatpush1.msra.mxu0 0.0
    %104 = vmatprep.subr.mxu0 0.0
    %105 = vmatpush1.msra.mxu0 0.0
    %106 = vmatprep.subr.mxu0 0.0
    %107 = vmatpush1.msra.mxu0 0.0
    %108 = vmatprep.subr.mxu0 0.0
    %109 = vmatpush1.msra.mxu0 0.0
    %110 = vmatprep.subr.mxu0 0.0
    %111 = vmatpush1.msra.mxu0 0.0
    %112 = vmatprep.subr.mxu0 0.0
    %113 = vmatpush1.msra.mxu0 0.0
    %114 = vmatprep.subr.mxu0 0.0
    %115 = vmatpush1.msra.mxu0 0.0
    %116 = vmatprep.subr.mxu0 0.0
    %117 = vmatpush1.msra.mxu0 0.0
    %118 = vmatprep.subr.mxu0 0.0
    %119 = vmatpush1.msra.mxu0 0.0
    %120 = vmatprep.subr.mxu0 0.0
    %121 = vmatpush1.msra.mxu0 0.0
    %122 = vmatprep.subr.mxu0 0.0
    %123 = vmatpush1.msra.mxu0 0.0
    %124 = vmatprep.subr.mxu0 0.0
    %125 = vmatpush1.msra.mxu0 0.0
    %126 = vmatprep.subr.mxu0 0.0
    %127 = vmatpush1.msra.mxu0 0.0
    %128 = vmatprep.subr.mxu0 0.0
    %129 = vmatpush1.msra.mxu0 0.0
    %130 = vmatprep.subr.mxu0 0.0
    %131 = vmatpush1.msra.mxu0 0.0
    %132 = vmatprep.subr.mxu0 0.0
    %133 = vmatpush1.msra.mxu0 0.0
    %134 = vmatprep.subr.mxu0 0.0
    %135 = vmatpush1.msra.mxu0 0.0
    %136 = vmatprep.subr.mxu0 0.0
    %137 = vmatpush1.msra.mxu0 0.0
    %138 = vmatprep.mubr.f32.mxu0 0.0
    %139 = vmatmul.mubr.f32.gmra.mrb[0].mxu0 %v69
    %v140 = vpop.f32.mrb[0].mxu0
    %v141 = vadd.f32 %v65, %v140
    %v142 = vpop.f32.mrb[0].mxu0
    %143 = vmatprep.mubr.f32.mxu0 0.0
    %144 = vmatmul.mubr.f32.gmra.mrb[0].mxu0 %v72
    %v145 = vpop.f32.mrb[0].mxu0
    %v146 = vadd.f32 %v65, %v145
    %v147 = vpop.f32.mrb[0].mxu0
    %148 = vdwg.mxu0
    %149 = vst.msk [vmem:[#allocation8] sm:$0xff] %vm67, %v141
    %150 = vst.msk [vmem:[#allocation8 + $0x8] sm:$0xff] %vm67, %v146
    // Predicated region
    $region26: #{multi_head_attention.4} parent=1 // pred_check
      _
    $region27: #{multi_head_attention.4} parent=1 // pred_check_branch
      %152 = sbr.rel (0) target = $region29
    $region28: #{multi_head_attention.4} parent=1 // pred_region
      %s154 = ssub.s32 256, 256
      %155 = vsyncadd [#allocation4], %s154
      %s156 = sshll.u32 [#allocation8], 4
      %s157 = int_to_ptr.vmem [resolvable:$true] %s156
      %162 = dma.vmem_to_hbm [thread:$0]  %s157, 256, %s3, [#allocation4], 128, 128, 8
    $region29: #{multi_head_attention.4} parent=1 // pred_fallthru
      _
    // Predicated region
    $region30: #{multi_head_attention.4} parent=1 // pred_check
      _
    $region31: #{multi_head_attention.4} parent=1 // pred_check_branch
      %164 = sbr.rel (0) target = $region33
    $region32: #{multi_head_attention.4} parent=1 // pred_region
      %165 = dma.done [#allocation4], 256
    $region33: #{multi_head_attention.4} parent=1 // pred_fallthru
      _
    %166 = vsyncpa [#allocation3], 1
    %167 = vsyncpa [#allocation6], 1
    %168 = vsyncpa [#allocation4], 1

// kernel: multi_head_attention.6
$region0: #{multi_head_attention.6}
  #allocation0 [shape = 'u32[]', space=smem, size = 0x4, offset = 0x4, fixed_abs, tag = 'smem constant byte address 0x4 - core index']
  #allocation1 [shape = 'u32[144,128]{1,0:T(1,128)}', space=vmem, size = 0x12000, scoped, tag = 'internal scratch']
  %s0 = inlined_call_operand.hbm [shape: f32[2,8,32], index: 0, kind: input, shape index: {}]
  %s1 = inlined_call_operand.hbm [shape: f32[2,8,64], index: 1, kind: input, shape index: {}]
  %s2 = inlined_call_operand.hbm [shape: f32[2,8,32], index: 2, kind: output, shape index: {}]
  %s3 = sld [smem:[#allocation0]]
  $region49: #{multi_head_attention.6} parent=0
    _
  %s5 = ssub.s32 1, %s3
  %s6 = scalar_select 0, %s5, %s3
  $region1: #{multi_head_attention.6} parent=0
    #allocation2 [shape = 'u8[8192]{0}', space=vmem, size = 0x2000, scoped, tag = 'input window, operand 0']
    #allocation3 [shape = 's32[2]{0}', space=sflag, size = 0x8, scoped, tag = 'scoped memory for multi_head_attention.6']
    #allocation4 [shape = 's32[2]{0}', space=sflag, size = 0x8, scoped, tag = 'scoped memory for multi_head_attention.6']
    #allocation5 [shape = 'u8[8192]{0}', space=vmem, size = 0x2000, scoped, tag = 'input window, operand 1']
    #allocation6 [shape = 's32[2]{0}', space=sflag, size = 0x8, scoped, tag = 'scoped memory for multi_head_attention.6']
    #allocation7 [shape = 'u8[8192]{0}', space=vmem, size = 0x2000, scoped, tag = 'output window, operand 0']
    %7 = vsyncpa [#allocation3], 0
    %s8 = scalar_lea.sflag [#allocation3], 1
    %9 = vsyncpa %s8, 0
    %10 = vsyncpa [#allocation6], 0
    %s11 = scalar_lea.sflag [#allocation6], 1
    %12 = vsyncpa %s11, 0
    %13 = vsyncpa [#allocation4], 0
    %s14 = scalar_lea.sflag [#allocation4], 1
    %15 = vsyncpa %s14, 0
    loop: start=0, step=1, limit=4
    $region2: #{multi_head_attention.6} parent=1 // loop_pre_header
      _
    $region3: #{multi_head_attention.6} parent=1 // loop_header
      %s17 = sphi 0, %s21
      %p18 = scmp.ge.s32.totalorder %s17, 4
      %s24 = sphi 0, %s36
      %s25 = sphi 0, %s32
      %s26 = sphi 0, %s24
      %s27 = sphi 0, %s25
      %s28 = sphi 0, %s26
      %s29 = sphi 0, %s27
      %s41 = sphi 0, %s43
      %s44 = sphi 0, %s41
      %s45 = sphi 0, %s44
      %s61 = sphi 0, %s45
      %s67 = sphi 0, %s69
      %s70 = sphi 0, %s67
      %s71 = sphi 0, %s70
      %s87 = sphi 0, %s71
      %s95 = sphi 0, %s97
      %s98 = sphi 0, %s95
      %s99 = sphi 0, %s98
      %s115 = sphi 0, %s99
    $region4: #{multi_head_attention.6} parent=1 // loop_header_branch
      %20 = sbr.rel (%p18) target = $region8
    $region5: #{multi_head_attention.6} parent=1 // loop_body
      %s22 = ssub.s32 %s17, 1
      %s23 = ssub.s32 %s17, 2
      %s30 = sadd.s32 1, %s25
      %p31 = scmp.ge.s32.totalorder %s30, 1
      %s32 = scalar_select %p31, 0, %s30
      %s33 = sadd.s32 1, %s24
      %s34 = scalar_select %p31, %s33, %s24
      %p35 = scmp.ge.s32.totalorder %s34, 2
      %s36 = scalar_select %p35, 0, %s34
      %s37 = ssub.s32 %s24, %s36
      %s38 = ssub.s32 %s25, %s32
      %s39 = sor.u32 %s37, %s38
      %p40 = scmp.eq.s32.totalorder %s39, 0
      %s42 = sadd.s32 %s41, 1
      %s43 = scalar_select %p40, %s41, %s42
      %p46 = pneg %p40
      %p47 = scmp.eq.s32.totalorder %s17, 1
      %p48 = por %p46, %p47
      %p49 = scmp.ne.s32.totalorder %s41, %s44
      %p50 = scmp.eq.s32.totalorder %s17, 0
      %p51 = por %p49, %p50
      %p52 = scmp.ne.s32.totalorder %s41, %s44
      %p53 = scmp.eq.s32.totalorder %s22, 1
      %p54 = por %p52, %p53
      %p55 = scmp.ne.s32.totalorder %s44, %s45
      %p56 = scmp.eq.s32.totalorder %s22, 0
      %p57 = por %p55, %p56
      %p58 = scmp.ne.s32.totalorder %s44, %s45
      %p59 = scmp.eq.s32.totalorder %s23, 1
      %p60 = por %p58, %p59
      %p62 = scmp.ne.s32.totalorder %s45, %s61
      %p63 = scmp.eq.s32.totalorder %s23, 0
      %p64 = por %p62, %p63
      %s65 = ssub.s32 %s24, %s36
      %p66 = scmp.eq.s32.totalorder %s65, 0
      %s68 = sadd.s32 %s67, 1
      %s69 = scalar_select %p66, %s67, %s68
      %p72 = pneg %p66
      %p73 = scmp.eq.s32.totalorder %s17, 1
      %p74 = por %p72, %p73
      %p75 = scmp.ne.s32.totalorder %s67, %s70
      %p76 = scmp.eq.s32.totalorder %s17, 0
      %p77 = por %p75, %p76
      %p78 = scmp.ne.s32.totalorder %s67, %s70
      %p79 = scmp.eq.s32.totalorder %s22, 1
      %p80 = por %p78, %p79
      %p81 = scmp.ne.s32.totalorder %s70, %s71
      %p82 = scmp.eq.s32.totalorder %s22, 0
      %p83 = por %p81, %p82
      %p84 = scmp.ne.s32.totalorder %s70, %s71
      %p85 = scmp.eq.s32.totalorder %s23, 1
      %p86 = por %p84, %p85
      %p88 = scmp.ne.s32.totalorder %s71, %s87
      %p89 = scmp.eq.s32.totalorder %s23, 0
      %p90 = por %p88, %p89
      %s91 = ssub.s32 %s24, %s36
      %s92 = ssub.s32 %s25, %s32
      %s93 = sor.u32 %s91, %s92
      %p94 = scmp.eq.s32.totalorder %s93, 0
      %s96 = sadd.s32 %s95, 1
      %s97 = scalar_select %p94, %s95, %s96
      %p100 = pneg %p94
      %p101 = scmp.eq.s32.totalorder %s17, 1
      %p102 = por %p100, %p101
      %p103 = scmp.ne.s32.totalorder %s95, %s98
      %p104 = scmp.eq.s32.totalorder %s17, 0
      %p105 = por %p103, %p104
      %p106 = scmp.ne.s32.totalorder %s95, %s98
      %p107 = scmp.eq.s32.totalorder %s22, 1
      %p108 = por %p106, %p107
      %p109 = scmp.ne.s32.totalorder %s98, %s99
      %p110 = scmp.eq.s32.totalorder %s22, 0
      %p111 = por %p109, %p110
      %p112 = scmp.ne.s32.totalorder %s98, %s99
      %p113 = scmp.eq.s32.totalorder %s23, 1
      %p114 = por %p112, %p113
      %p116 = scmp.ne.s32.totalorder %s99, %s115
      %p117 = scmp.eq.s32.totalorder %s23, 0
      %p118 = por %p116, %p117
      %p119 = scmp.le.s32.totalorder 1, %s17
      %p120 = scmp.lt.s32.totalorder %s17, 3
      %p121 = pnand %p119, %p120
      %p122 = pneg %p121
      // Predicated region
      $region9: #{multi_head_attention.6} parent=5 // pred_check
        _
      $region10: #{multi_head_attention.6} parent=5 // pred_check_branch
        %124 = sbr.rel (%p121) target = $region12
      $region11: #{multi_head_attention.6} parent=5 // pred_region
        %s125 = ssub.s32 %s17, 1
      $region12: #{multi_head_attention.6} parent=5 // pred_fallthru
        _
      %p126 = scmp.lt.s32.totalorder %s17, 2
      // Predicated region
      $region13: #{multi_head_attention.6} parent=5 // pred_check
        %p127 = pneg %p126
      $region14: #{multi_head_attention.6} parent=5 // pred_check_branch
        %129 = sbr.rel (%p127) target = $region16
      $region15: #{multi_head_attention.6} parent=5 // pred_region
        // Predicated region
        $region17: #{multi_head_attention.6} parent=15 // pred_check
          %p130 = pneg %p51
        $region18: #{multi_head_attention.6} parent=15 // pred_check_branch
          %132 = sbr.rel (%p130) target = $region20
        $region19: #{multi_head_attention.6} parent=15 // pred_region
          %s133 = sand.u32 %s41, 1
          %s134 = scalar_lea.sflag [#allocation3], %s133
          %s135 = sand.u32 %s41, 1
          %s136 = smul.addr %s135, 8
          %s137 = scalar_lea.vmem [#allocation2], %s136
          %s139 = ssub.s32 128, 128
          %140 = vsyncadd %s134, %s139
          %s141 = sadd.s32 %s25, %s24
          %s142 = smul.addr %s141, 128
          %s143 = scalar_lea.hbm %s0, %s142
          %s145 = sshll.u32 %s137, 4
          %s146 = int_to_ptr.vmem [resolvable:$true] %s145
          %148 = dma.hbm_to_vmem [thread:$0]  %s143, 128, %s146, %s134
        $region20: #{multi_head_attention.6} parent=15 // pred_fallthru
          _
        // Predicated region
        $region21: #{multi_head_attention.6} parent=15 // pred_check
          %p149 = pneg %p77
        $region22: #{multi_head_attention.6} parent=15 // pred_check_branch
          %151 = sbr.rel (%p149) target = $region24
        $region23: #{multi_head_attention.6} parent=15 // pred_region
          %s152 = sand.u32 %s67, 1
          %s153 = scalar_lea.sflag [#allocation6], %s152
          %s154 = sand.u32 %s67, 1
          %s155 = smul.addr %s154, 8
          %s156 = scalar_lea.vmem [#allocation5], %s155
          %s158 = ssub.s32 128, 128
          %159 = vsyncadd %s153, %s158
          %s160 = smul.addr %s24, 128
          %s161 = scalar_lea.hbm %s1, %s160
          %s163 = sshll.u32 %s156, 4
          %s164 = int_to_ptr.vmem [resolvable:$true] %s163
          %166 = dma.hbm_to_vmem [thread:$0]  %s161, 128, %s164, %s153
        $region24: #{multi_head_attention.6} parent=15 // pred_fallthru
          _
      $region16: #{multi_head_attention.6} parent=5 // pred_fallthru
        _
      %p167 = scmp.le.s32.totalorder 1, %s17
      %p168 = scmp.lt.s32.totalorder %s17, 3
      %p169 = pnand %p167, %p168
      %p170 = pneg %p169
      // Predicated region
      $region25: #{multi_head_attention.6} parent=5 // pred_check
        _
      $region26: #{multi_head_attention.6} parent=5 // pred_check_branch
        %172 = sbr.rel (%p169) target = $region28
      $region27: #{multi_head_attention.6} parent=5 // pred_region
        %s173 = ssub.s32 %s17, 1
        %s174 = sand.u32 %s44, 1
        %s175 = scalar_lea.sflag [#allocation3], %s174
        %s176 = sand.u32 %s44, 1
        %s177 = smul.addr %s176, 8
        %s178 = scalar_lea.vmem [#allocation2], %s177
        // Predicated region
        $region29: #{multi_head_attention.6} parent=27 // pred_check
          %p179 = pneg %p57
        $region30: #{multi_head_attention.6} parent=27 // pred_check_branch
          %181 = sbr.rel (%p179) target = $region32
        $region31: #{multi_head_attention.6} parent=27 // pred_region
          %182 = dma.done %s175, 128
        $region32: #{multi_head_attention.6} parent=27 // pred_fallthru
          _
        %s183 = sand.u32 %s70, 1
        %s184 = scalar_lea.sflag [#allocation6], %s183
        %s185 = sand.u32 %s70, 1
        %s186 = smul.addr %s185, 8
        %s187 = scalar_lea.vmem [#allocation5], %s186
        // Predicated region
        $region33: #{multi_head_attention.6} parent=27 // pred_check
          %p188 = pneg %p83
        $region34: #{multi_head_attention.6} parent=27 // pred_check_branch
          %190 = sbr.rel (%p188) target = $region36
        $region35: #{multi_head_attention.6} parent=27 // pred_region
          %191 = dma.done %s184, 128
        $region36: #{multi_head_attention.6} parent=27 // pred_fallthru
          _
        %s192 = sand.u32 %s44, 1
        %s193 = scalar_lea.sflag [#allocation3], %s192
        %s194 = sand.u32 %s44, 1
        %s195 = smul.addr %s194, 8
        %s196 = scalar_lea.vmem [#allocation2], %s195
        %p197 = pneg %p57
        %p198 = pneg %p54
        %s199 = sand.u32 %s70, 1
        %s200 = scalar_lea.sflag [#allocation6], %s199
        %s201 = sand.u32 %s70, 1
        %s202 = smul.addr %s201, 8
        %s203 = scalar_lea.vmem [#allocation5], %s202
        %p204 = pneg %p83
        %p205 = pneg %p80
        %p206 = pneg %p111
        %p207 = pneg %p108
        %s208 = sand.u32 %s98, 1
        %s209 = scalar_lea.sflag [#allocation4], %s208
        %s210 = sand.u32 %s98, 1
        %s211 = smul.addr %s210, 8
        %s212 = scalar_lea.vmem [#allocation7], %s211
        %v213 = vld [vmem:[%s178] sm:$0xff]
        %v214 = vld [vmem:[%s187] sm:$0xff]
        %vm215 = vcmask 64512
        %v217 = vsel %vm215, %v213, 0
        %v220 = vsel %vm215, %v214, 0
        %222 = vmatprep.subr.mxu0 0.0
        %223 = vmatpush1.xpose.msra.mxu0 %v220
        %224 = vmatprep.subr.mxu0 0.0
        %225 = vmatpush1.xpose.msra.mxu0 0.0
        %226 = vmatprep.subr.mxu0 0.0
        %227 = vmatpush1.xpose.msra.mxu0 0.0
        %228 = vmatprep.subr.mxu0 0.0
        %229 = vmatpush1.xpose.msra.mxu0 0.0
        %230 = vmatprep.subr.mxu0 0.0
        %231 = vmatpush1.xpose.msra.mxu0 0.0
        %232 = vmatprep.subr.mxu0 0.0
        %233 = vmatpush1.xpose.msra.mxu0 0.0
        %234 = vmatprep.subr.mxu0 0.0
        %235 = vmatpush1.xpose.msra.mxu0 0.0
        %236 = vmatprep.subr.mxu0 0.0
        %237 = vmatpush1.xpose.msra.mxu0 0.0
        %238 = vmatprep.subr.mxu0 0.0
        %239 = vmatpush1.xpose.msra.mxu0 0.0
        %240 = vmatprep.subr.mxu0 0.0
        %241 = vmatpush1.xpose.msra.mxu0 0.0
        %242 = vmatprep.subr.mxu0 0.0
        %243 = vmatpush1.xpose.msra.mxu0 0.0
        %244 = vmatprep.subr.mxu0 0.0
        %245 = vmatpush1.xpose.msra.mxu0 0.0
        %246 = vmatprep.subr.mxu0 0.0
        %247 = vmatpush1.xpose.msra.mxu0 0.0
        %248 = vmatprep.subr.mxu0 0.0
        %249 = vmatpush1.xpose.msra.mxu0 0.0
        %250 = vmatprep.subr.mxu0 0.0
        %251 = vmatpush1.xpose.msra.mxu0 0.0
        %252 = vmatprep.subr.mxu0 0.0
        %253 = vmatpush1.xpose.msra.mxu0 0.0
        %254 = vmatprep.subr.mxu0 0.0
        %255 = vmatpush1.xpose.msra.mxu0 0.0
        %256 = vmatprep.subr.mxu0 0.0
        %257 = vmatpush1.xpose.msra.mxu0 0.0
        %258 = vmatprep.subr.mxu0 0.0
        %259 = vmatpush1.xpose.msra.mxu0 0.0
        %260 = vmatprep.subr.mxu0 0.0
        %261 = vmatpush1.xpose.msra.mxu0 0.0
        %262 = vmatprep.subr.mxu0 0.0
        %263 = vmatpush1.xpose.msra.mxu0 0.0
        %264 = vmatprep.subr.mxu0 0.0
        %265 = vmatpush1.xpose.msra.mxu0 0.0
        %266 = vmatprep.subr.mxu0 0.0
        %267 = vmatpush1.xpose.msra.mxu0 0.0
        %268 = vmatprep.subr.mxu0 0.0
        %269 = vmatpush1.xpose.msra.mxu0 0.0
        %270 = vmatprep.subr.mxu0 0.0
        %271 = vmatpush1.xpose.msra.mxu0 0.0
        %272 = vmatprep.subr.mxu0 0.0
        %273 = vmatpush1.xpose.msra.mxu0 0.0
        %274 = vmatprep.subr.mxu0 0.0
        %275 = vmatpush1.xpose.msra.mxu0 0.0
        %276 = vmatprep.subr.mxu0 0.0
        %277 = vmatpush1.xpose.msra.mxu0 0.0
        %278 = vmatprep.subr.mxu0 0.0
        %279 = vmatpush1.xpose.msra.mxu0 0.0
        %280 = vmatprep.subr.mxu0 0.0
        %281 = vmatpush1.xpose.msra.mxu0 0.0
        %282 = vmatprep.subr.mxu0 0.0
        %283 = vmatpush1.xpose.msra.mxu0 0.0
        %284 = vmatprep.subr.mxu0 0.0
        %285 = vmatpush1.xpose.msra.mxu0 0.0
        %286 = vmatprep.mubr.f32.mxu0 0.0
        %287 = vmatmul.mubr.f32.gmra.mrb[0].mxu0 %v217
        %v288 = vpop.f32.mrb[0].mxu0
        %v289 = vadd.f32 0.0, %v288
        %v290 = vpop.f32.mrb[0].mxu0
        %291 = vdwg.mxu0
        %v292 = vsel %vm215, %v289, -inf
        %293 = vmax.xlane.f32.xlu0 %v292
        %v294 = vpop.xlane.xlu0 %293
        %v295 = vsub.f32 %v289, %v294
        %v296 = vmul.f32 %v295, 1.442695
        %v297 = vpow.pop %v296
        %v298 = vsel %vm215, %v297, 0.0
        %299 = vadd.xlane.f32.xlu0 %v298
        %v300 = vpop.xlane.xlu0 %299
        %301 = vrot.lane.b32.xlu0 %v214, 96
        %v302 = vpop.permute.xlu0 %301
        %v305 = vsel %vm215, %v297, 0
        %307 = vmatprep.subr.mxu0 0.0
        %308 = vmatpush1.msra.mxu0 %v302
        %309 = vmatprep.subr.mxu0 0.0
        %310 = vmatpush1.msra.mxu0 0.0
        %311 = vmatprep.subr.mxu0 0.0
        %312 = vmatpush1.msra.mxu0 0.0
        %313 = vmatprep.subr.mxu0 0.0
        %314 = vmatpush1.msra.mxu0 0.0
        %315 = vmatprep.subr.mxu0 0.0
        %316 = vmatpush1.msra.mxu0 0.0
        %317 = vmatprep.subr.mxu0 0.0
        %318 = vmatpush1.msra.mxu0 0.0
        %319 = vmatprep.subr.mxu0 0.0
        %320 = vmatpush1.msra.mxu0 0.0
        %321 = vmatprep.subr.mxu0 0.0
        %322 = vmatpush1.msra.mxu0 0.0
        %323 = vmatprep.subr.mxu0 0.0
        %324 = vmatpush1.msra.mxu0 0.0
        %325 = vmatprep.subr.mxu0 0.0
        %326 = vmatpush1.msra.mxu0 0.0
        %327 = vmatprep.subr.mxu0 0.0
        %328 = vmatpush1.msra.mxu0 0.0
        %329 = vmatprep.subr.mxu0 0.0
        %330 = vmatpush1.msra.mxu0 0.0
        %331 = vmatprep.subr.mxu0 0.0
        %332 = vmatpush1.msra.mxu0 0.0
        %333 = vmatprep.subr.mxu0 0.0
        %334 = vmatpush1.msra.mxu0 0.0
        %335 = vmatprep.subr.mxu0 0.0
        %336 = vmatpush1.msra.mxu0 0.0
        %337 = vmatprep.subr.mxu0 0.0
        %338 = vmatpush1.msra.mxu0 0.0
        %339 = vmatprep.subr.mxu0 0.0
        %340 = vmatpush1.msra.mxu0 0.0
        %341 = vmatprep.subr.mxu0 0.0
        %342 = vmatpush1.msra.mxu0 0.0
        %343 = vmatprep.subr.mxu0 0.0
        %344 = vmatpush1.msra.mxu0 0.0
        %345 = vmatprep.subr.mxu0 0.0
        %346 = vmatpush1.msra.mxu0 0.0
        %347 = vmatprep.subr.mxu0 0.0
        %348 = vmatpush1.msra.mxu0 0.0
        %349 = vmatprep.subr.mxu0 0.0
        %350 = vmatpush1.msra.mxu0 0.0
        %351 = vmatprep.subr.mxu0 0.0
        %352 = vmatpush1.msra.mxu0 0.0
        %353 = vmatprep.subr.mxu0 0.0
        %354 = vmatpush1.msra.mxu0 0.0
        %355 = vmatprep.subr.mxu0 0.0
        %356 = vmatpush1.msra.mxu0 0.0
        %357 = vmatprep.subr.mxu0 0.0
        %358 = vmatpush1.msra.mxu0 0.0
        %359 = vmatprep.subr.mxu0 0.0
        %360 = vmatpush1.msra.mxu0 0.0
        %361 = vmatprep.subr.mxu0 0.0
        %362 = vmatpush1.msra.mxu0 0.0
        %363 = vmatprep.subr.mxu0 0.0
        %364 = vmatpush1.msra.mxu0 0.0
        %365 = vmatprep.subr.mxu0 0.0
        %366 = vmatpush1.msra.mxu0 0.0
        %367 = vmatprep.subr.mxu0 0.0
        %368 = vmatpush1.msra.mxu0 0.0
        %369 = vmatprep.subr.mxu0 0.0
        %370 = vmatpush1.msra.mxu0 0.0
        %371 = vmatprep.mubr.f32.mxu0 0.0
        %372 = vmatmul.mubr.f32.gmra.mrb[0].mxu0 %v305
        %v373 = vpop.f32.mrb[0].mxu0
        %v374 = vadd.f32 0.0, %v373
        %v375 = vpop.f32.mrb[0].mxu0
        %376 = vdwg.mxu0
        %v377 = vmul.f32 %v300, 5.656854
        %v378 = vrcp.pop %v377
        %v379 = vmul.f32 %v374, %v378
        %380 = vrot.lane.b32.xlu0 %v213, 120
        %v381 = vpop.permute.xlu0 %380
        %382 = vrot.lane.b32.xlu0 %v214, 120
        %v383 = vpop.permute.xlu0 %382
        %v384 = vsel %vm215, %v381, 0
        %v386 = vsel %vm215, %v383, 0
        %388 = vmatprep.subr.mxu0 0.0
        %389 = vmatpush1.xpose.msra.mxu0 %v386
        %390 = vmatprep.subr.mxu0 0.0
        %391 = vmatpush1.xpose.msra.mxu0 0.0
        %392 = vmatprep.subr.mxu0 0.0
        %393 = vmatpush1.xpose.msra.mxu0 0.0
        %394 = vmatprep.subr.mxu0 0.0
        %395 = vmatpush1.xpose.msra.mxu0 0.0
        %396 = vmatprep.subr.mxu0 0.0
        %397 = vmatpush1.xpose.msra.mxu0 0.0
        %398 = vmatprep.subr.mxu0 0.0
        %399 = vmatpush1.xpose.msra.mxu0 0.0
        %400 = vmatprep.subr.mxu0 0.0
        %401 = vmatpush1.xpose.msra.mxu0 0.0
        %402 = vmatprep.subr.mxu0 0.0
        %403 = vmatpush1.xpose.msra.mxu0 0.0
        %404 = vmatprep.subr.mxu0 0.0
        %405 = vmatpush1.xpose.msra.mxu0 0.0
        %406 = vmatprep.subr.mxu0 0.0
        %407 = vmatpush1.xpose.msra.mxu0 0.0
        %408 = vmatprep.subr.mxu0 0.0
        %409 = vmatpush1.xpose.msra.mxu0 0.0
        %410 = vmatprep.subr.mxu0 0.0
        %411 = vmatpush1.xpose.msra.mxu0 0.0
        %412 = vmatprep.subr.mxu0 0.0
        %413 = vmatpush1.xpose.msra.mxu0 0.0
        %414 = vmatprep.subr.mxu0 0.0
        %415 = vmatpush1.xpose.msra.mxu0 0.0
        %416 = vmatprep.subr.mxu0 0.0
        %417 = vmatpush1.xpose.msra.mxu0 0.0
        %418 = vmatprep.subr.mxu0 0.0
        %419 = vmatpush1.xpose.msra.mxu0 0.0
        %420 = vmatprep.subr.mxu0 0.0
        %421 = vmatpush1.xpose.msra.mxu0 0.0
        %422 = vmatprep.subr.mxu0 0.0
        %423 = vmatpush1.xpose.msra.mxu0 0.0
        %424 = vmatprep.subr.mxu0 0.0
        %425 = vmatpush1.xpose.msra.mxu0 0.0
        %426 = vmatprep.subr.mxu0 0.0
        %427 = vmatpush1.xpose.msra.mxu0 0.0
        %428 = vmatprep.subr.mxu0 0.0
        %429 = vmatpush1.xpose.msra.mxu0 0.0
        %430 = vmatprep.subr.mxu0 0.0
        %431 = vmatpush1.xpose.msra.mxu0 0.0
        %432 = vmatprep.subr.mxu0 0.0
        %433 = vmatpush1.xpose.msra.mxu0 0.0
        %434 = vmatprep.subr.mxu0 0.0
        %435 = vmatpush1.xpose.msra.mxu0 0.0
        %436 = vmatprep.subr.mxu0 0.0
        %437 = vmatpush1.xpose.msra.mxu0 0.0
        %438 = vmatprep.subr.mxu0 0.0
        %439 = vmatpush1.xpose.msra.mxu0 0.0
        %440 = vmatprep.subr.mxu0 0.0
        %441 = vmatpush1.xpose.msra.mxu0 0.0
        %442 = vmatprep.subr.mxu0 0.0
        %443 = vmatpush1.xpose.msra.mxu0 0.0
        %444 = vmatprep.subr.mxu0 0.0
        %445 = vmatpush1.xpose.msra.mxu0 0.0
        %446 = vmatprep.subr.mxu0 0.0
        %447 = vmatpush1.xpose.msra.mxu0 0.0
        %448 = vmatprep.subr.mxu0 0.0
        %449 = vmatpush1.xpose.msra.mxu0 0.0
        %450 = vmatprep.subr.mxu0 0.0
        %451 = vmatpush1.xpose.msra.mxu0 0.0
        %452 = vmatprep.mubr.f32.mxu0 0.0
        %453 = vmatmul.mubr.f32.gmra.mrb[0].mxu0 %v384
        %v454 = vpop.f32.mrb[0].mxu0
        %v455 = vadd.f32 0.0, %v454
        %v456 = vpop.f32.mrb[0].mxu0
        %457 = vdwg.mxu0
        %v458 = vsel %vm215, %v455, -inf
        %459 = vmax.xlane.f32.xlu0 %v458
        %v460 = vpop.xlane.xlu0 %459
        %v461 = vsub.f32 %v455, %v460
        %v462 = vmul.f32 %v461, 1.442695
        %v463 = vpow.pop %v462
        %v464 = vsel %vm215, %v463, 0.0
        %465 = vadd.xlane.f32.xlu0 %v464
        %v466 = vpop.xlane.xlu0 %465
        %467 = vrot.lane.b32.xlu0 %v214, 88
        %v468 = vpop.permute.xlu0 %467
        %v471 = vsel %vm215, %v463, 0
        %473 = vmatprep.subr.mxu0 0.0
        %474 = vmatpush1.msra.mxu0 %v468
        %475 = vmatprep.subr.mxu0 0.0
        %476 = vmatpush1.msra.mxu0 0.0
        %477 = vmatprep.subr.mxu0 0.0
        %478 = vmatpush1.msra.mxu0 0.0
        %479 = vmatprep.subr.mxu0 0.0
        %480 = vmatpush1.msra.mxu0 0.0
        %481 = vmatprep.subr.mxu0 0.0
        %482 = vmatpush1.msra.mxu0 0.0
        %483 = vmatprep.subr.mxu0 0.0
        %484 = vmatpush1.msra.mxu0 0.0
        %485 = vmatprep.subr.mxu0 0.0
        %486 = vmatpush1.msra.mxu0 0.0
        %487 = vmatprep.subr.mxu0 0.0
        %488 = vmatpush1.msra.mxu0 0.0
        %489 = vmatprep.subr.mxu0 0.0
        %490 = vmatpush1.msra.mxu0 0.0
        %491 = vmatprep.subr.mxu0 0.0
        %492 = vmatpush1.msra.mxu0 0.0
        %493 = vmatprep.subr.mxu0 0.0
        %494 = vmatpush1.msra.mxu0 0.0
        %495 = vmatprep.subr.mxu0 0.0
        %496 = vmatpush1.msra.mxu0 0.0
        %497 = vmatprep.subr.mxu0 0.0
        %498 = vmatpush1.msra.mxu0 0.0
        %499 = vmatprep.subr.mxu0 0.0
        %500 = vmatpush1.msra.mxu0 0.0
        %501 = vmatprep.subr.mxu0 0.0
        %502 = vmatpush1.msra.mxu0 0.0
        %503 = vmatprep.subr.mxu0 0.0
        %504 = vmatpush1.msra.mxu0 0.0
        %505 = vmatprep.subr.mxu0 0.0
        %506 = vmatpush1.msra.mxu0 0.0
        %507 = vmatprep.subr.mxu0 0.0
        %508 = vmatpush1.msra.mxu0 0.0
        %509 = vmatprep.subr.mxu0 0.0
        %510 = vmatpush1.msra.mxu0 0.0
        %511 = vmatprep.subr.mxu0 0.0
        %512 = vmatpush1.msra.mxu0 0.0
        %513 = vmatprep.subr.mxu0 0.0
        %514 = vmatpush1.msra.mxu0 0.0
        %515 = vmatprep.subr.mxu0 0.0
        %516 = vmatpush1.msra.mxu0 0.0
        %517 = vmatprep.subr.mxu0 0.0
        %518 = vmatpush1.msra.mxu0 0.0
        %519 = vmatprep.subr.mxu0 0.0
        %520 = vmatpush1.msra.mxu0 0.0
        %521 = vmatprep.subr.mxu0 0.0
        %522 = vmatpush1.msra.mxu0 0.0
        %523 = vmatprep.subr.mxu0 0.0
        %524 = vmatpush1.msra.mxu0 0.0
        %525 = vmatprep.subr.mxu0 0.0
        %526 = vmatpush1.msra.mxu0 0.0
        %527 = vmatprep.subr.mxu0 0.0
        %528 = vmatpush1.msra.mxu0 0.0
        %529 = vmatprep.subr.mxu0 0.0
        %530 = vmatpush1.msra.mxu0 0.0
        %531 = vmatprep.subr.mxu0 0.0
        %532 = vmatpush1.msra.mxu0 0.0
        %533 = vmatprep.subr.mxu0 0.0
        %534 = vmatpush1.msra.mxu0 0.0
        %535 = vmatprep.subr.mxu0 0.0
        %536 = vmatpush1.msra.mxu0 0.0
        %537 = vmatprep.mubr.f32.mxu0 0.0
        %538 = vmatmul.mubr.f32.gmra.mrb[0].mxu0 %v471
        %v539 = vpop.f32.mrb[0].mxu0
        %v540 = vadd.f32 0.0, %v539
        %v541 = vpop.f32.mrb[0].mxu0
        %542 = vdwg.mxu0
        %v543 = vmul.f32 %v466, 5.656854
        %v544 = vrcp.pop %v543
        %v545 = vmul.f32 %v540, %v544
        %546 = vrot.lane.b32.xlu0 %v213, 112
        %v547 = vpop.permute.xlu0 %546
        %548 = vrot.lane.b32.xlu0 %v214, 112
        %v549 = vpop.permute.xlu0 %548
        %v550 = vsel %vm215, %v547, 0
        %v552 = vsel %vm215, %v549, 0
        %554 = vmatprep.subr.mxu0 0.0
        %555 = vmatpush1.xpose.msra.mxu0 %v552
        %556 = vmatprep.subr.mxu0 0.0
        %557 = vmatpush1.xpose.msra.mxu0 0.0
        %558 = vmatprep.subr.mxu0 0.0
        %559 = vmatpush1.xpose.msra.mxu0 0.0
        %560 = vmatprep.subr.mxu0 0.0
        %561 = vmatpush1.xpose.msra.mxu0 0.0
        %562 = vmatprep.subr.mxu0 0.0
        %563 = vmatpush1.xpose.msra.mxu0 0.0
        %564 = vmatprep.subr.mxu0 0.0
        %565 = vmatpush1.xpose.msra.mxu0 0.0
        %566 = vmatprep.subr.mxu0 0.0
        %567 = vmatpush1.xpose.msra.mxu0 0.0
        %568 = vmatprep.subr.mxu0 0.0
        %569 = vmatpush1.xpose.msra.mxu0 0.0
        %570 = vmatprep.subr.mxu0 0.0
        %571 = vmatpush1.xpose.msra.mxu0 0.0
        %572 = vmatprep.subr.mxu0 0.0
        %573 = vmatpush1.xpose.msra.mxu0 0.0
        %574 = vmatprep.subr.mxu0 0.0
        %575 = vmatpush1.xpose.msra.mxu0 0.0
        %576 = vmatprep.subr.mxu0 0.0
        %577 = vmatpush1.xpose.msra.mxu0 0.0
        %578 = vmatprep.subr.mxu0 0.0
        %579 = vmatpush1.xpose.msra.mxu0 0.0
        %580 = vmatprep.subr.mxu0 0.0
        %581 = vmatpush1.xpose.msra.mxu0 0.0
        %582 = vmatprep.subr.mxu0 0.0
        %583 = vmatpush1.xpose.msra.mxu0 0.0
        %584 = vmatprep.subr.mxu0 0.0
        %585 = vmatpush1.xpose.msra.mxu0 0.0
        %586 = vmatprep.subr.mxu0 0.0
        %587 = vmatpush1.xpose.msra.mxu0 0.0
        %588 = vmatprep.subr.mxu0 0.0
        %589 = vmatpush1.xpose.msra.mxu0 0.0
        %590 = vmatprep.subr.mxu0 0.0
        %591 = vmatpush1.xpose.msra.mxu0 0.0
        %592 = vmatprep.subr.mxu0 0.0
        %593 = vmatpush1.xpose.msra.mxu0 0.0
        %594 = vmatprep.subr.mxu0 0.0
        %595 = vmatpush1.xpose.msra.mxu0 0.0
        %596 = vmatprep.subr.mxu0 0.0
        %597 = vmatpush1.xpose.msra.mxu0 0.0
        %598 = vmatprep.subr.mxu0 0.0
        %599 = vmatpush1.xpose.msra.mxu0 0.0
        %600 = vmatprep.subr.mxu0 0.0
        %601 = vmatpush1.xpose.msra.mxu0 0.0
        %602 = vmatprep.subr.mxu0 0.0
        %603 = vmatpush1.xpose.msra.mxu0 0.0
        %604 = vmatprep.subr.mxu0 0.0
        %605 = vmatpush1.xpose.msra.mxu0 0.0
        %606 = vmatprep.subr.mxu0 0.0
        %607 = vmatpush1.xpose.msra.mxu0 0.0
        %608 = vmatprep.subr.mxu0 0.0
        %609 = vmatpush1.xpose.msra.mxu0 0.0
        %610 = vmatprep.subr.mxu0 0.0
        %611 = vmatpush1.xpose.msra.mxu0 0.0
        %612 = vmatprep.subr.mxu0 0.0
        %613 = vmatpush1.xpose.msra.mxu0 0.0
        %614 = vmatprep.subr.mxu0 0.0
        %615 = vmatpush1.xpose.msra.mxu0 0.0
        %616 = vmatprep.subr.mxu0 0.0
        %617 = vmatpush1.xpose.msra.mxu0 0.0
        %618 = vmatprep.mubr.f32.mxu0 0.0
        %619 = vmatmul.mubr.f32.gmra.mrb[0].mxu0 %v550
        %v620 = vpop.f32.mrb[0].mxu0
        %v621 = vadd.f32 0.0, %v620
        %v622 = vpop.f32.mrb[0].mxu0
        %623 = vdwg.mxu0
        %v624 = vsel %vm215, %v621, -inf
        %625 = vmax.xlane.f32.xlu0 %v624
        %v626 = vpop.xlane.xlu0 %625
        %v627 = vsub.f32 %v621, %v626
        %v628 = vmul.f32 %v627, 1.442695
        %v629 = vpow.pop %v628
        %v630 = vsel %vm215, %v629, 0.0
        %631 = vadd.xlane.f32.xlu0 %v630
        %v632 = vpop.xlane.xlu0 %631
        %633 = vrot.lane.b32.xlu0 %v214, 80
        %v634 = vpop.permute.xlu0 %633
        %v637 = vsel %vm215, %v629, 0
        %639 = vmatprep.subr.mxu0 0.0
        %640 = vmatpush1.msra.mxu0 %v634
        %641 = vmatprep.subr.mxu0 0.0
        %642 = vmatpush1.msra.mxu0 0.0
        %643 = vmatprep.subr.mxu0 0.0
        %644 = vmatpush1.msra.mxu0 0.0
        %645 = vmatprep.subr.mxu0 0.0
        %646 = vmatpush1.msra.mxu0 0.0
        %647 = vmatprep.subr.mxu0 0.0
        %648 = vmatpush1.msra.mxu0 0.0
        %649 = vmatprep.subr.mxu0 0.0
        %650 = vmatpush1.msra.mxu0 0.0
        %651 = vmatprep.subr.mxu0 0.0
        %652 = vmatpush1.msra.mxu0 0.0
        %653 = vmatprep.subr.mxu0 0.0
        %654 = vmatpush1.msra.mxu0 0.0
        %655 = vmatprep.subr.mxu0 0.0
        %656 = vmatpush1.msra.mxu0 0.0
        %657 = vmatprep.subr.mxu0 0.0
        %658 = vmatpush1.msra.mxu0 0.0
        %659 = vmatprep.subr.mxu0 0.0
        %660 = vmatpush1.msra.mxu0 0.0
        %661 = vmatprep.subr.mxu0 0.0
        %662 = vmatpush1.msra.mxu0 0.0
        %663 = vmatprep.subr.mxu0 0.0
        %664 = vmatpush1.msra.mxu0 0.0
        %665 = vmatprep.subr.mxu0 0.0
        %666 = vmatpush1.msra.mxu0 0.0
        %667 = vmatprep.subr.mxu0 0.0
        %668 = vmatpush1.msra.mxu0 0.0
        %669 = vmatprep.subr.mxu0 0.0
        %670 = vmatpush1.msra.mxu0 0.0
        %671 = vmatprep.subr.mxu0 0.0
        %672 = vmatpush1.msra.mxu0 0.0
        %673 = vmatprep.subr.mxu0 0.0
        %674 = vmatpush1.msra.mxu0 0.0
        %675 = vmatprep.subr.mxu0 0.0
        %676 = vmatpush1.msra.mxu0 0.0
        %677 = vmatprep.subr.mxu0 0.0
        %678 = vmatpush1.msra.mxu0 0.0
        %679 = vmatprep.subr.mxu0 0.0
        %680 = vmatpush1.msra.mxu0 0.0
        %681 = vmatprep.subr.mxu0 0.0
        %682 = vmatpush1.msra.mxu0 0.0
        %683 = vmatprep.subr.mxu0 0.0
        %684 = vmatpush1.msra.mxu0 0.0
        %685 = vmatprep.subr.mxu0 0.0
        %686 = vmatpush1.msra.mxu0 0.0
        %687 = vmatprep.subr.mxu0 0.0
        %688 = vmatpush1.msra.mxu0 0.0
        %689 = vmatprep.subr.mxu0 0.0
        %690 = vmatpush1.msra.mxu0 0.0
        %691 = vmatprep.subr.mxu0 0.0
        %692 = vmatpush1.msra.mxu0 0.0
        %693 = vmatprep.subr.mxu0 0.0
        %694 = vmatpush1.msra.mxu0 0.0
        %695 = vmatprep.subr.mxu0 0.0
        %696 = vmatpush1.msra.mxu0 0.0
        %697 = vmatprep.subr.mxu0 0.0
        %698 = vmatpush1.msra.mxu0 0.0
        %699 = vmatprep.subr.mxu0 0.0
        %700 = vmatpush1.msra.mxu0 0.0
        %701 = vmatprep.subr.mxu0 0.0
        %702 = vmatpush1.msra.mxu0 0.0
        %703 = vmatprep.mubr.f32.mxu0 0.0
        %704 = vmatmul.mubr.f32.gmra.mrb[0].mxu0 %v637
        %v705 = vpop.f32.mrb[0].mxu0
        %v706 = vadd.f32 0.0, %v705
        %v707 = vpop.f32.mrb[0].mxu0
        %708 = vdwg.mxu0
        %v709 = vmul.f32 %v632, 5.656854
        %v710 = vrcp.pop %v709
        %v711 = vmul.f32 %v706, %v710
        %712 = vrot.lane.b32.xlu0 %v213, 104
        %v713 = vpop.permute.xlu0 %712
        %714 = vrot.lane.b32.xlu0 %v214, 104
        %v715 = vpop.permute.xlu0 %714
        %v716 = vsel %vm215, %v713, 0
        %v718 = vsel %vm215, %v715, 0
        %720 = vmatprep.subr.mxu0 0.0
        %721 = vmatpush1.xpose.msra.mxu0 %v718
        %722 = vmatprep.subr.mxu0 0.0
        %723 = vmatpush1.xpose.msra.mxu0 0.0
        %724 = vmatprep.subr.mxu0 0.0
        %725 = vmatpush1.xpose.msra.mxu0 0.0
        %726 = vmatprep.subr.mxu0 0.0
        %727 = vmatpush1.xpose.msra.mxu0 0.0
        %728 = vmatprep.subr.mxu0 0.0
        %729 = vmatpush1.xpose.msra.mxu0 0.0
        %730 = vmatprep.subr.mxu0 0.0
        %731 = vmatpush1.xpose.msra.mxu0 0.0
        %732 = vmatprep.subr.mxu0 0.0
        %733 = vmatpush1.xpose.msra.mxu0 0.0
        %734 = vmatprep.subr.mxu0 0.0
        %735 = vmatpush1.xpose.msra.mxu0 0.0
        %736 = vmatprep.subr.mxu0 0.0
        %737 = vmatpush1.xpose.msra.mxu0 0.0
        %738 = vmatprep.subr.mxu0 0.0
        %739 = vmatpush1.xpose.msra.mxu0 0.0
        %740 = vmatprep.subr.mxu0 0.0
        %741 = vmatpush1.xpose.msra.mxu0 0.0
        %742 = vmatprep.subr.mxu0 0.0
        %743 = vmatpush1.xpose.msra.mxu0 0.0
        %744 = vmatprep.subr.mxu0 0.0
        %745 = vmatpush1.xpose.msra.mxu0 0.0
        %746 = vmatprep.subr.mxu0 0.0
        %747 = vmatpush1.xpose.msra.mxu0 0.0
        %748 = vmatprep.subr.mxu0 0.0
        %749 = vmatpush1.xpose.msra.mxu0 0.0
        %750 = vmatprep.subr.mxu0 0.0
        %751 = vmatpush1.xpose.msra.mxu0 0.0
        %752 = vmatprep.subr.mxu0 0.0
        %753 = vmatpush1.xpose.msra.mxu0 0.0
        %754 = vmatprep.subr.mxu0 0.0
        %755 = vmatpush1.xpose.msra.mxu0 0.0
        %756 = vmatprep.subr.mxu0 0.0
        %757 = vmatpush1.xpose.msra.mxu0 0.0
        %758 = vmatprep.subr.mxu0 0.0
        %759 = vmatpush1.xpose.msra.mxu0 0.0
        %760 = vmatprep.subr.mxu0 0.0
        %761 = vmatpush1.xpose.msra.mxu0 0.0
        %762 = vmatprep.subr.mxu0 0.0
        %763 = vmatpush1.xpose.msra.mxu0 0.0
        %764 = vmatprep.subr.mxu0 0.0
        %765 = vmatpush1.xpose.msra.mxu0 0.0
        %766 = vmatprep.subr.mxu0 0.0
        %767 = vmatpush1.xpose.msra.mxu0 0.0
        %768 = vmatprep.subr.mxu0 0.0
        %769 = vmatpush1.xpose.msra.mxu0 0.0
        %770 = vmatprep.subr.mxu0 0.0
        %771 = vmatpush1.xpose.msra.mxu0 0.0
        %772 = vmatprep.subr.mxu0 0.0
        %773 = vmatpush1.xpose.msra.mxu0 0.0
        %774 = vmatprep.subr.mxu0 0.0
        %775 = vmatpush1.xpose.msra.mxu0 0.0
        %776 = vmatprep.subr.mxu0 0.0
        %777 = vmatpush1.xpose.msra.mxu0 0.0
        %778 = vmatprep.subr.mxu0 0.0
        %779 = vmatpush1.xpose.msra.mxu0 0.0
        %780 = vmatprep.subr.mxu0 0.0
        %781 = vmatpush1.xpose.msra.mxu0 0.0
        %782 = vmatprep.subr.mxu0 0.0
        %783 = vmatpush1.xpose.msra.mxu0 0.0
        %784 = vmatprep.mubr.f32.mxu0 0.0
        %785 = vmatmul.mubr.f32.gmra.mrb[0].mxu0 %v716
        %v786 = vpop.f32.mrb[0].mxu0
        %v787 = vadd.f32 0.0, %v786
        %v788 = vpop.f32.mrb[0].mxu0
        %789 = vdwg.mxu0
        %v790 = vsel %vm215, %v787, -inf
        %791 = vmax.xlane.f32.xlu0 %v790
        %v792 = vpop.xlane.xlu0 %791
        %v793 = vsub.f32 %v787, %v792
        %v794 = vmul.f32 %v793, 1.442695
        %v795 = vpow.pop %v794
        %v796 = vsel %vm215, %v795, 0.0
        %797 = vadd.xlane.f32.xlu0 %v796
        %v798 = vpop.xlane.xlu0 %797
        %799 = vrot.lane.b32.xlu0 %v214, 72
        %v800 = vpop.permute.xlu0 %799
        %v803 = vsel %vm215, %v795, 0
        %805 = vmatprep.subr.mxu0 0.0
        %806 = vmatpush1.msra.mxu0 %v800
        %807 = vmatprep.subr.mxu0 0.0
        %808 = vmatpush1.msra.mxu0 0.0
        %809 = vmatprep.subr.mxu0 0.0
        %810 = vmatpush1.msra.mxu0 0.0
        %811 = vmatprep.subr.mxu0 0.0
        %812 = vmatpush1.msra.mxu0 0.0
        %813 = vmatprep.subr.mxu0 0.0
        %814 = vmatpush1.msra.mxu0 0.0
        %815 = vmatprep.subr.mxu0 0.0
        %816 = vmatpush1.msra.mxu0 0.0
        %817 = vmatprep.subr.mxu0 0.0
        %818 = vmatpush1.msra.mxu0 0.0
        %819 = vmatprep.subr.mxu0 0.0
        %820 = vmatpush1.msra.mxu0 0.0
        %821 = vmatprep.subr.mxu0 0.0
        %822 = vmatpush1.msra.mxu0 0.0
        %823 = vmatprep.subr.mxu0 0.0
        %824 = vmatpush1.msra.mxu0 0.0
        %825 = vmatprep.subr.mxu0 0.0
        %826 = vmatpush1.msra.mxu0 0.0
        %827 = vmatprep.subr.mxu0 0.0
        %828 = vmatpush1.msra.mxu0 0.0
        %829 = vmatprep.subr.mxu0 0.0
        %830 = vmatpush1.msra.mxu0 0.0
        %831 = vmatprep.subr.mxu0 0.0
        %832 = vmatpush1.msra.mxu0 0.0
        %833 = vmatprep.subr.mxu0 0.0
        %834 = vmatpush1.msra.mxu0 0.0
        %835 = vmatprep.subr.mxu0 0.0
        %836 = vmatpush1.msra.mxu0 0.0
        %837 = vmatprep.subr.mxu0 0.0
        %838 = vmatpush1.msra.mxu0 0.0
        %839 = vmatprep.subr.mxu0 0.0
        %840 = vmatpush1.msra.mxu0 0.0
        %841 = vmatprep.subr.mxu0 0.0
        %842 = vmatpush1.msra.mxu0 0.0
        %843 = vmatprep.subr.mxu0 0.0
        %844 = vmatpush1.msra.mxu0 0.0
        %845 = vmatprep.subr.mxu0 0.0
        %846 = vmatpush1.msra.mxu0 0.0
        %847 = vmatprep.subr.mxu0 0.0
        %848 = vmatpush1.msra.mxu0 0.0
        %849 = vmatprep.subr.mxu0 0.0
        %850 = vmatpush1.msra.mxu0 0.0
        %851 = vmatprep.subr.mxu0 0.0
        %852 = vmatpush1.msra.mxu0 0.0
        %853 = vmatprep.subr.mxu0 0.0
        %854 = vmatpush1.msra.mxu0 0.0
        %855 = vmatprep.subr.mxu0 0.0
        %856 = vmatpush1.msra.mxu0 0.0
        %857 = vmatprep.subr.mxu0 0.0
        %858 = vmatpush1.msra.mxu0 0.0
        %859 = vmatprep.subr.mxu0 0.0
        %860 = vmatpush1.msra.mxu0 0.0
        %861 = vmatprep.subr.mxu0 0.0
        %862 = vmatpush1.msra.mxu0 0.0
        %863 = vmatprep.subr.mxu0 0.0
        %864 = vmatpush1.msra.mxu0 0.0
        %865 = vmatprep.subr.mxu0 0.0
        %866 = vmatpush1.msra.mxu0 0.0
        %867 = vmatprep.subr.mxu0 0.0
        %868 = vmatpush1.msra.mxu0 0.0
        %869 = vmatprep.mubr.f32.mxu0 0.0
        %870 = vmatmul.mubr.f32.gmra.mrb[0].mxu0 %v803
        %v871 = vpop.f32.mrb[0].mxu0
        %v872 = vadd.f32 0.0, %v871
        %v873 = vpop.f32.mrb[0].mxu0
        %874 = vdwg.mxu0
        %v875 = vmul.f32 %v798, 5.656854
        %v876 = vrcp.pop %v875
        %v877 = vmul.f32 %v872, %v876
        %879 = vrot.lane.b32.xlu0 %v545, 8
        %v880 = vpop.permute.xlu0 %879
        %883 = vrot.lane.b32.xlu0 %v711, 16
        %v884 = vpop.permute.xlu0 %883
        %887 = vrot.lane.b32.xlu0 %v877, 24
        %v888 = vpop.permute.xlu0 %887
        %v890 = vsel %vm215, %v379, %v880
        %vm891 = vcmask 130048
        %v892 = vsel %vm891, %v890, %v884
        %vm893 = vcmask 195584
        %v894 = vsel %vm893, %v892, %v888
        %vm895 = vcmask 261120
        %896 = vst.msk [vmem:[%s212] sm:$0xff] %vm895, %v894
        %s897 = sand.u32 %s98, 1
        %s898 = scalar_lea.sflag [#allocation4], %s897
        %s899 = sand.u32 %s98, 1
        %s900 = smul.addr %s899, 8
        %s901 = scalar_lea.vmem [#allocation7], %s900
        // Predicated region
        $region37: #{multi_head_attention.6} parent=27 // pred_check
          %p902 = pneg %p108
        $region38: #{multi_head_attention.6} parent=27 // pred_check_branch
          %904 = sbr.rel (%p902) target = $region40
        $region39: #{multi_head_attention.6} parent=27 // pred_region
          %s906 = ssub.s32 128, 128
          %907 = vsyncadd %s898, %s906
          %s908 = sadd.s32 %s27, %s26
          %s909 = smul.addr %s908, 128
          %s910 = scalar_lea.hbm %s2, %s909
          %s912 = sshll.u32 %s901, 4
          %s913 = int_to_ptr.vmem [resolvable:$true] %s912
          %915 = dma.vmem_to_hbm [thread:$0]  %s913, 128, %s910, %s898
        $region40: #{multi_head_attention.6} parent=27 // pred_fallthru
          _
      $region28: #{multi_head_attention.6} parent=5 // pred_fallthru
        _
      %p916 = scmp.le.s32.totalorder 2, %s17
      // Predicated region
      $region41: #{multi_head_attention.6} parent=5 // pred_check
        %p917 = pneg %p916
      $region42: #{multi_head_attention.6} parent=5 // pred_check_branch
        %919 = sbr.rel (%p917) target = $region44
      $region43: #{multi_head_attention.6} parent=5 // pred_region
        %s920 = ssub.s32 %s17, 2
        // Predicated region
        $region45: #{multi_head_attention.6} parent=43 // pred_check
          %p921 = pneg %p114
        $region46: #{multi_head_attention.6} parent=43 // pred_check_branch
          %923 = sbr.rel (%p921) target = $region48
        $region47: #{multi_head_attention.6} parent=43 // pred_region
          %s924 = sand.u32 %s99, 1
          %s925 = scalar_lea.sflag [#allocation4], %s924
          %s926 = sand.u32 %s99, 1
          %s927 = smul.addr %s926, 8
          %s928 = scalar_lea.vmem [#allocation7], %s927
          %929 = dma.done %s925, 128
        $region48: #{multi_head_attention.6} parent=43 // pred_fallthru
          _
      $region44: #{multi_head_attention.6} parent=5 // pred_fallthru
        _
    $region6: #{multi_head_attention.6} parent=1 // loop_footer
      %s21 = sadd.s32 1, %s17
    $region7: #{multi_head_attention.6} parent=1 // loop_footer_branch
      %16 = sbr.rel target = $region3
    $region8: #{multi_head_attention.6} parent=1 // loop_exit
      _
    %930 = vsyncpa [#allocation3], 1
    %s931 = scalar_lea.sflag [#allocation3], 1
    %932 = vsyncpa %s931, 1
    %933 = vsyncpa [#allocation6], 1
    %s934 = scalar_lea.sflag [#allocation6], 1
    %935 = vsyncpa %s934, 1
    %936 = vsyncpa [#allocation4], 1
    %s937 = scalar_lea.sflag [#allocation4], 1
    %938 = vsyncpa %s937, 1

</llo_original>
